<compile_context>
chip_gen: v7x
topology: tpu7x:2x2x1
jax: 0.10.0
libtpu: 0.0.40
codegen_flags: <defaults>
</compile_context>

<pallas_src>
import functools
import math

import jax
import jax.numpy as jnp
from jax import lax
from jax.experimental import pallas as pl
from jax.experimental.pallas import tpu as pltpu


_NEG_BIG = -1e8     # matches the module's -100000000.0 for visited nodes
_PAD_NEG = -1e30    # padded columns: far below -1e8 -> exactly zero probability after exp


def _round_up(x, m):
    return ((x + m - 1) // m) * m


def _decoder_kernel(last_ref,                      # SMEM (B, G_pad) int32 [scalar prefetch]
                    emb_ref, emb_t_ref,            # (1, N_pad, H), (1, H, N_pad)
                    cnd_ref, cdn_ref,              # (1, N_pad, D), (1, D, N_pad)
                    mask_ref,                      # (1, G_TILE, N_pad)
                    w_lf_ref, wq_graph_ref, w_visited_ref,   # (H, H) each
                    probs_ref,                     # (1, G_TILE, N_pad)
                    last_emb_sc, last_coord_sc,    # VMEM (G_TILE, H), (G_TILE, D)
                    *, n_true, h_true, g_tile, d_coord, tanh_clipping, use_bf16):
    b = pl.program_id(0)
    g_base = pl.program_id(1) * g_tile

    # ---- gather last-node embedding / coordinate rows via dynamic sublane slices ----
    def _gather_one(g):
        idx = last_ref[b, g_base + g]
        last_emb_sc[pl.ds(g, 1), :] = emb_ref[0, pl.ds(idx, 1), :]
        last_coord_sc[pl.ds(g, 1), :] = cnd_ref[0, pl.ds(idx, 1), :]

    if g_tile <= 32:                       # small static trip count: unroll in Python
        for g in range(g_tile):
            _gather_one(g)
    else:
        def _body(g, carry):
            _gather_one(g)
            return carry
        lax.fori_loop(0, g_tile, _body, 0)

    emb = emb_ref[0]                       # (N_pad, H)   padded rows are zero
    emb_t = emb_t_ref[0]                   # (H, N_pad)
    cdn = cdn_ref[0]                       # (D, N_pad)
    mask = mask_ref[0]                     # (G_TILE, N_pad)
    last_emb = last_emb_sc[...]            # (G_TILE, H)
    last_coord = last_coord_sc[...]        # (G_TILE, D)

    def mm(a, bmat):
        if use_bf16:
            a = a.astype(jnp.bfloat16)
            bmat = bmat.astype(jnp.bfloat16)
        return jnp.dot(a, bmat, preferred_element_type=jnp.float32)

    # ---- query terms ----
    inv_n = 1.0 / float(n_true)
    graph_emb = jnp.sum(emb, axis=0, keepdims=True) * inv_n          # (1, H) mean over true N
    q_graph = mm(graph_emb, wq_graph_ref[...])                       # (1, H)

    visited = mask == -jnp.inf                                       # reused predicate
    mask_visited = jnp.where(visited, 1.0, mask)                     # (G_TILE, N_pad)
    pooled = mm(mask_visited, emb) * inv_n                           # (G_TILE, H)
    q_visited = mm(pooled, w_visited_ref[...])

    q_lf = mm(last_emb, w_lf_ref[...])                               # folded Wq_last + Wq_first
    final_q = q_lf + q_graph + q_visited                             # (G_TILE, H)

    # ---- pairwise distances, componentwise on the VPU (lane-dense (D, N) layout) ----
    d2 = None
    for d in range(d_coord):
        diff = last_coord[:, d:d + 1] - cdn[d:d + 1, :]              # (G_TILE, N_pad)
        term = diff * diff
        d2 = term if d2 is None else d2 + term
    dist = jnp.sqrt(d2)

    # ---- score, clip, mask, softmax ----
    logits = mm(final_q, emb_t)                                      # (G_TILE, N_pad), MXU-natural
    score = logits * (1.0 / math.sqrt(float(h_true))) - dist * (1.0 / math.sqrt(2.0))
    score_clipped = tanh_clipping * jnp.tanh(score)
    mask_prob = jnp.where(visited, _NEG_BIG, mask)                   # padded cols keep -1e30
    score_masked = score_clipped + mask_prob

    m = jnp.max(score_masked, axis=-1, keepdims=True)
    e = jnp.exp(score_masked - m)
    s = jnp.sum(e, axis=-1, keepdims=True)
    inv = pl.reciprocal(s, approx=True)
    inv = inv * (2.0 - s * inv)            # one Newton step -> near-exact 1/s
    probs_ref[0] = e * inv


def decoder_forward(embeddings, coordinates, last_node, group_ninf_mask, params,
                    tanh_clipping=10.0, use_bf16=False):
    B, N, H = embeddings.shape
    D = coordinates.shape[-1]
    G = group_ninf_mask.shape[1]

    # ---- padding to lane/sublane-friendly shapes ----
    N_pad = _round_up(N, 128)
    G_pad8 = _round_up(G, 8)
    # keep double-buffered (mask + probs) tiles under ~24 MiB (v7x 64 MiB VMEM budget)
    g_cap = max(8, ((24 * 1024 * 1024) // (16 * N_pad)) // 8 * 8)
    G_TILE = min(G_pad8, g_cap)
    G_pad = _round_up(G, G_TILE)

    emb_p = jnp.pad(embeddings, ((0, 0), (0, N_pad - N), (0, 0)))
    coords_p = jnp.pad(coordinates, ((0, 0), (0, N_pad - N), (0, 0)))
    emb_t = jnp.transpose(emb_p, (0, 2, 1))                          # (B, H, N_pad)
    coords_dn = jnp.transpose(coords_p, (0, 2, 1))                   # (B, D, N_pad)

    # padded columns -> -1e30 (forced ~0 prob); padded group rows -> 0.0 (benign, sliced off)
    mask_p = jnp.pad(group_ninf_mask, ((0, 0), (0, 0), (0, N_pad - N)),
                     constant_values=_PAD_NEG)
    mask_p = jnp.pad(mask_p, ((0, 0), (0, G_pad - G), (0, 0)), constant_values=0.0)

    last_p = jnp.pad(last_node.astype(jnp.int32), ((0, 0), (0, G_pad - G)))

    w_lf = params["Wq_last"] + params["Wq_first"]                    # exact fold

    kernel = functools.partial(
        _decoder_kernel, n_true=N, h_true=H, g_tile=G_TILE, d_coord=D,
        tanh_clipping=tanh_clipping, use_bf16=use_bf16)

    w_spec = pl.BlockSpec((H, H), lambda b, g, last: (0, 0))
    grid_spec = pltpu.PrefetchScalarGridSpec(
        num_scalar_prefetch=1,
        grid=(B, G_pad // G_TILE),
        in_specs=[
            pl.BlockSpec((1, N_pad, H), lambda b, g, last: (b, 0, 0)),      # embeddings
            pl.BlockSpec((1, H, N_pad), lambda b, g, last: (b, 0, 0)),      # embeddings^T
            pl.BlockSpec((1, N_pad, D), lambda b, g, last: (b, 0, 0)),      # coords (N, D)
            pl.BlockSpec((1, D, N_pad), lambda b, g, last: (b, 0, 0)),      # coords (D, N)
            pl.BlockSpec((1, G_TILE, N_pad), lambda b, g, last: (b, g, 0)), # group mask
            w_spec, w_spec, w_spec,                                          # W_lf, Wq_graph, W_visited
        ],
        out_specs=pl.BlockSpec((1, G_TILE, N_pad), lambda b, g, last: (b, g, 0)),
        scratch_shapes=[
            pltpu.VMEM((G_TILE, H), jnp.float32),   # gathered last-node embeddings
            pltpu.VMEM((G_TILE, D), jnp.float32),   # gathered last-node coordinates
        ],
    )

    # VMEM budget: double-buffered tiles + weights + scratch, with headroom; >= 32 MiB.
    f32 = 4
    per_step = (2 * N_pad * H + 2 * N_pad * D + 2 * G_TILE * N_pad) * f32
    est = 2 * (per_step + 3 * H * H * f32) + G_TILE * (H + D) * f32
    vmem_limit = int(max(2 * est, 32 * 1024 * 1024))

    flops = 2 * B * (G_pad // G_TILE) * (
        G_TILE * N_pad * H            # pooled (mask @ emb)
        + 2 * G_TILE * H * H + H * H  # q_visited, q_lf, q_graph
        + G_TILE * N_pad * H)         # logits
    cost = pl.CostEstimate(
        flops=int(flops),
        transcendentals=int(2 * B * G_pad * N_pad),
        bytes_accessed=int(f32 * (B * (2 * N_pad * H + 2 * N_pad * D + 2 * G_pad * N_pad)
                                  + 3 * H * H) + 4 * B * G_pad),
    )

    probs = pl.pallas_call(
        kernel,
        out_shape=jax.ShapeDtypeStruct((B, G_pad, N_pad), jnp.float32),
        grid_spec=grid_spec,
        compiler_params=pltpu.CompilerParams(
            dimension_semantics=("parallel", "parallel"),
            vmem_limit_bytes=vmem_limit),
        cost_estimate=cost,
    )(last_p, emb_p, emb_t, coords_p, coords_dn, mask_p,
      w_lf, params["Wq_graph"], params["W_visited"])

    return probs[:, :G, :N]


def decoder_reference(embeddings, coordinates, last_node, mask, params,
                      tanh_clipping=10.0):
    """Pure-JAX reference mirroring the PyTorch forward (multi_pointer=1 path)."""
    B, N, H = embeddings.shape
    last_emb = jax.vmap(lambda e, i: e[i])(embeddings, last_node)        # (B,G,H)
    last_coord = jax.vmap(lambda c, i: c[i])(coordinates, last_node)     # (B,G,D)
    q_last = last_emb @ params["Wq_last"]
    q_first = last_emb @ params["Wq_first"]
    q_graph = embeddings.mean(axis=1, keepdims=True) @ params["Wq_graph"]
    mask_visited = jnp.where(jnp.isneginf(mask), 1.0, mask)
    q_visited = (mask_visited @ embeddings / N) @ params["W_visited"]
    final_q = q_last + q_first + q_graph + q_visited
    dist = jnp.sqrt(jnp.sum(
        (last_coord[:, :, None, :] - coordinates[:, None, :, :]) ** 2, axis=-1))
    score = jnp.einsum("bgh,bnh->bgn", final_q, embeddings) / math.sqrt(H) \
        - dist / math.sqrt(2.0)
    score_clipped = tanh_clipping * jnp.tanh(score)
    mask_prob = jnp.where(jnp.isneginf(mask), -1e8, mask)
    return jax.nn.softmax(score_clipped + mask_prob, axis=-1)


if __name__ == "__main__":
    B, N, G, H, D = 2, 16, 8, 32, 2

    key = jax.random.PRNGKey(0)
    k_emb, k_coord, k_last, k_mask, kw1, kw2, kw3, kw4 = jax.random.split(key, 8)

    embeddings = jax.random.normal(k_emb, (B, N, H), dtype=jnp.float32)
    coordinates = jax.random.uniform(k_coord, (B, N, D), dtype=jnp.float32)
    last_node = jax.random.randint(k_last, (B, G), 0, N, dtype=jnp.int32)
    visited = jax.random.bernoulli(k_mask, 0.3, (B, G, N))
    group_ninf_mask = jnp.where(visited, -jnp.inf, 0.0).astype(jnp.float32)

    scale = 1.0 / math.sqrt(H)
    params = {
        "Wq_graph": jax.random.normal(kw1, (H, H), dtype=jnp.float32) * scale,
        "Wq_first": jax.random.normal(kw2, (H, H), dtype=jnp.float32) * scale,
        "Wq_last": jax.random.normal(kw3, (H, H), dtype=jnp.float32) * scale,
        "W_visited": jax.random.normal(kw4, (H, H), dtype=jnp.float32) * scale,
    }

    probs = decoder_forward(embeddings, coordinates, last_node, group_ninf_mask, params)
    probs = jax.block_until_ready(probs)

    ref = decoder_reference(embeddings, coordinates, last_node, group_ninf_mask, params)
    assert probs.shape == (B, G, N)
    assert jnp.allclose(probs, ref, atol=5e-4, rtol=5e-4), "mismatch vs JAX reference"
    assert jnp.allclose(jnp.sum(probs, axis=-1), 1.0, atol=5e-4), "probs don't sum to 1"

    print("KERNEL_OK")
</pallas_src>

<mosaic_0001>
module attributes {stable_mosaic.version = 11 : i64} {
  func.func @_decoder_kernel(%arg0: i32, %arg1: i32, %arg2: memref<2x8xi32, #tpu.memory_space<smem>>, %arg3: memref<1x128x32xf32, #tpu.memory_space<vmem>>, %arg4: memref<1x32x128xf32, #tpu.memory_space<vmem>>, %arg5: memref<1x128x2xf32, #tpu.memory_space<vmem>>, %arg6: memref<1x2x128xf32, #tpu.memory_space<vmem>>, %arg7: memref<1x8x128xf32, #tpu.memory_space<vmem>>, %arg8: memref<32x32xf32, #tpu.memory_space<vmem>>, %arg9: memref<32x32xf32, #tpu.memory_space<vmem>>, %arg10: memref<32x32xf32, #tpu.memory_space<vmem>>, %arg11: memref<1x8x128xf32, #tpu.memory_space<vmem>>, %arg12: memref<8x32xf32, #tpu.memory_space<vmem>>, %arg13: memref<8x2xf32, #tpu.memory_space<vmem>>) attributes {dimension_semantics = [#tpu.dimension_semantics<parallel>, #tpu.dimension_semantics<parallel>], iteration_bounds = array<i64: 2, 1>, scalar_prefetch = 1 : i64, scratch_operands = 2 : i64, tpu.core_type = #tpu.core_type<tc>, window_params = [{transform_indices = @transform_0, window_bounds = array<i64: 1, 128, 32>}, {transform_indices = @transform_1, window_bounds = array<i64: 1, 32, 128>}, {transform_indices = @transform_2, window_bounds = array<i64: 1, 128, 2>}, {transform_indices = @transform_3, window_bounds = array<i64: 1, 2, 128>}, {transform_indices = @transform_4, window_bounds = array<i64: 1, 8, 128>}, {pipeline_mode = #tpu.pipeline_mode<synchronous>, transform_indices = @transform_5, window_bounds = array<i64: 32, 32>}, {pipeline_mode = #tpu.pipeline_mode<synchronous>, transform_indices = @transform_6, window_bounds = array<i64: 32, 32>}, {pipeline_mode = #tpu.pipeline_mode<synchronous>, transform_indices = @transform_7, window_bounds = array<i64: 32, 32>}, {transform_indices = @transform_8, window_bounds = array<i64: 1, 8, 128>}]} {
    %c8_i32 = arith.constant 8 : i32
    %0 = arith.muli %arg1, %c8_i32 : i32
    %c0_i32 = arith.constant 0 : i32
    %1 = arith.addi %0, %c0_i32 : i32
    %2 = arith.index_cast %arg0 : i32 to index
    %3 = arith.index_cast %1 : i32 to index
    %4 = memref.load %arg2[%2, %3] : memref<2x8xi32, #tpu.memory_space<smem>>
    %c0 = arith.constant 0 : index
    %5 = arith.index_cast %4 : i32 to index
    %c0_0 = arith.constant 0 : index
    %6 = vector.load %arg3[%c0, %5, %c0_0] : memref<1x128x32xf32, #tpu.memory_space<vmem>>, vector<1x1x32xf32>
    %7 = vector.shape_cast %6 : vector<1x1x32xf32> to vector<1x32xf32>
    %c0_1 = arith.constant 0 : index
    %c0_2 = arith.constant 0 : index
    %8 = vector.load %arg12[%c0_1, %c0_2] : memref<8x32xf32, #tpu.memory_space<vmem>>, vector<1x32xf32>
    tpu.vector_store %arg12[%c0_1, %c0_2], %7 {strides = array<i32>} : memref<8x32xf32, #tpu.memory_space<vmem>>, vector<1x32xf32>,
    %c0_3 = arith.constant 0 : index
    %9 = arith.index_cast %4 : i32 to index
    %c0_4 = arith.constant 0 : index
    %10 = vector.load %arg5[%c0_3, %9, %c0_4] : memref<1x128x2xf32, #tpu.memory_space<vmem>>, vector<1x1x2xf32>
    %11 = vector.shape_cast %10 : vector<1x1x2xf32> to vector<1x2xf32>
    %c0_5 = arith.constant 0 : index
    %c0_6 = arith.constant 0 : index
    %12 = vector.load %arg13[%c0_5, %c0_6] : memref<8x2xf32, #tpu.memory_space<vmem>>, vector<1x2xf32>
    tpu.vector_store %arg13[%c0_5, %c0_6], %11 {strides = array<i32>} : memref<8x2xf32, #tpu.memory_space<vmem>>, vector<1x2xf32>,
    %c1_i32 = arith.constant 1 : i32
    %13 = arith.addi %0, %c1_i32 : i32
    %14 = arith.index_cast %arg0 : i32 to index
    %15 = arith.index_cast %13 : i32 to index
    %16 = memref.load %arg2[%14, %15] : memref<2x8xi32, #tpu.memory_space<smem>>
    %c0_7 = arith.constant 0 : index
    %17 = arith.index_cast %16 : i32 to index
    %c0_8 = arith.constant 0 : index
    %18 = vector.load %arg3[%c0_7, %17, %c0_8] : memref<1x128x32xf32, #tpu.memory_space<vmem>>, vector<1x1x32xf32>
    %19 = vector.shape_cast %18 : vector<1x1x32xf32> to vector<1x32xf32>
    %c1 = arith.constant 1 : index
    %c0_9 = arith.constant 0 : index
    %20 = vector.load %arg12[%c1, %c0_9] : memref<8x32xf32, #tpu.memory_space<vmem>>, vector<1x32xf32>
    tpu.vector_store %arg12[%c1, %c0_9], %19 {strides = array<i32>} : memref<8x32xf32, #tpu.memory_space<vmem>>, vector<1x32xf32>,
    %c0_10 = arith.constant 0 : index
    %21 = arith.index_cast %16 : i32 to index
    %c0_11 = arith.constant 0 : index
    %22 = vector.load %arg5[%c0_10, %21, %c0_11] : memref<1x128x2xf32, #tpu.memory_space<vmem>>, vector<1x1x2xf32>
    %23 = vector.shape_cast %22 : vector<1x1x2xf32> to vector<1x2xf32>
    %c1_12 = arith.constant 1 : index
    %c0_13 = arith.constant 0 : index
    %24 = vector.load %arg13[%c1_12, %c0_13] : memref<8x2xf32, #tpu.memory_space<vmem>>, vector<1x2xf32>
    tpu.vector_store %arg13[%c1_12, %c0_13], %23 {strides = array<i32>} : memref<8x2xf32, #tpu.memory_space<vmem>>, vector<1x2xf32>,
    %c2_i32 = arith.constant 2 : i32
    %25 = arith.addi %0, %c2_i32 : i32
    %26 = arith.index_cast %arg0 : i32 to index
    %27 = arith.index_cast %25 : i32 to index
    %28 = memref.load %arg2[%26, %27] : memref<2x8xi32, #tpu.memory_space<smem>>
    %c0_14 = arith.constant 0 : index
    %29 = arith.index_cast %28 : i32 to index
    %c0_15 = arith.constant 0 : index
    %30 = vector.load %arg3[%c0_14, %29, %c0_15] : memref<1x128x32xf32, #tpu.memory_space<vmem>>, vector<1x1x32xf32>
    %31 = vector.shape_cast %30 : vector<1x1x32xf32> to vector<1x32xf32>
    %c2 = arith.constant 2 : index
    %c0_16 = arith.constant 0 : index
    %32 = vector.load %arg12[%c2, %c0_16] : memref<8x32xf32, #tpu.memory_space<vmem>>, vector<1x32xf32>
    tpu.vector_store %arg12[%c2, %c0_16], %31 {strides = array<i32>} : memref<8x32xf32, #tpu.memory_space<vmem>>, vector<1x32xf32>,
    %c0_17 = arith.constant 0 : index
    %33 = arith.index_cast %28 : i32 to index
    %c0_18 = arith.constant 0 : index
    %34 = vector.load %arg5[%c0_17, %33, %c0_18] : memref<1x128x2xf32, #tpu.memory_space<vmem>>, vector<1x1x2xf32>
    %35 = vector.shape_cast %34 : vector<1x1x2xf32> to vector<1x2xf32>
    %c2_19 = arith.constant 2 : index
    %c0_20 = arith.constant 0 : index
    %36 = vector.load %arg13[%c2_19, %c0_20] : memref<8x2xf32, #tpu.memory_space<vmem>>, vector<1x2xf32>
    tpu.vector_store %arg13[%c2_19, %c0_20], %35 {strides = array<i32>} : memref<8x2xf32, #tpu.memory_space<vmem>>, vector<1x2xf32>,
    %c3_i32 = arith.constant 3 : i32
    %37 = arith.addi %0, %c3_i32 : i32
    %38 = arith.index_cast %arg0 : i32 to index
    %39 = arith.index_cast %37 : i32 to index
    %40 = memref.load %arg2[%38, %39] : memref<2x8xi32, #tpu.memory_space<smem>>
    %c0_21 = arith.constant 0 : index
    %41 = arith.index_cast %40 : i32 to index
    %c0_22 = arith.constant 0 : index
    %42 = vector.load %arg3[%c0_21, %41, %c0_22] : memref<1x128x32xf32, #tpu.memory_space<vmem>>, vector<1x1x32xf32>
    %43 = vector.shape_cast %42 : vector<1x1x32xf32> to vector<1x32xf32>
    %c3 = arith.constant 3 : index
    %c0_23 = arith.constant 0 : index
    %44 = vector.load %arg12[%c3, %c0_23] : memref<8x32xf32, #tpu.memory_space<vmem>>, vector<1x32xf32>
    tpu.vector_store %arg12[%c3, %c0_23], %43 {strides = array<i32>} : memref<8x32xf32, #tpu.memory_space<vmem>>, vector<1x32xf32>,
    %c0_24 = arith.constant 0 : index
    %45 = arith.index_cast %40 : i32 to index
    %c0_25 = arith.constant 0 : index
    %46 = vector.load %arg5[%c0_24, %45, %c0_25] : memref<1x128x2xf32, #tpu.memory_space<vmem>>, vector<1x1x2xf32>
    %47 = vector.shape_cast %46 : vector<1x1x2xf32> to vector<1x2xf32>
    %c3_26 = arith.constant 3 : index
    %c0_27 = arith.constant 0 : index
    %48 = vector.load %arg13[%c3_26, %c0_27] : memref<8x2xf32, #tpu.memory_space<vmem>>, vector<1x2xf32>
    tpu.vector_store %arg13[%c3_26, %c0_27], %47 {strides = array<i32>} : memref<8x2xf32, #tpu.memory_space<vmem>>, vector<1x2xf32>,
    %c4_i32 = arith.constant 4 : i32
    %49 = arith.addi %0, %c4_i32 : i32
    %50 = arith.index_cast %arg0 : i32 to index
    %51 = arith.index_cast %49 : i32 to index
    %52 = memref.load %arg2[%50, %51] : memref<2x8xi32, #tpu.memory_space<smem>>
    %c0_28 = arith.constant 0 : index
    %53 = arith.index_cast %52 : i32 to index
    %c0_29 = arith.constant 0 : index
    %54 = vector.load %arg3[%c0_28, %53, %c0_29] : memref<1x128x32xf32, #tpu.memory_space<vmem>>, vector<1x1x32xf32>
    %55 = vector.shape_cast %54 : vector<1x1x32xf32> to vector<1x32xf32>
    %c4 = arith.constant 4 : index
    %c0_30 = arith.constant 0 : index
    %56 = vector.load %arg12[%c4, %c0_30] : memref<8x32xf32, #tpu.memory_space<vmem>>, vector<1x32xf32>
    tpu.vector_store %arg12[%c4, %c0_30], %55 {strides = array<i32>} : memref<8x32xf32, #tpu.memory_space<vmem>>, vector<1x32xf32>,
    %c0_31 = arith.constant 0 : index
    %57 = arith.index_cast %52 : i32 to index
    %c0_32 = arith.constant 0 : index
    %58 = vector.load %arg5[%c0_31, %57, %c0_32] : memref<1x128x2xf32, #tpu.memory_space<vmem>>, vector<1x1x2xf32>
    %59 = vector.shape_cast %58 : vector<1x1x2xf32> to vector<1x2xf32>
    %c4_33 = arith.constant 4 : index
    %c0_34 = arith.constant 0 : index
    %60 = vector.load %arg13[%c4_33, %c0_34] : memref<8x2xf32, #tpu.memory_space<vmem>>, vector<1x2xf32>
    tpu.vector_store %arg13[%c4_33, %c0_34], %59 {strides = array<i32>} : memref<8x2xf32, #tpu.memory_space<vmem>>, vector<1x2xf32>,
    %c5_i32 = arith.constant 5 : i32
    %61 = arith.addi %0, %c5_i32 : i32
    %62 = arith.index_cast %arg0 : i32 to index
    %63 = arith.index_cast %61 : i32 to index
    %64 = memref.load %arg2[%62, %63] : memref<2x8xi32, #tpu.memory_space<smem>>
    %c0_35 = arith.constant 0 : index
    %65 = arith.index_cast %64 : i32 to index
    %c0_36 = arith.constant 0 : index
    %66 = vector.load %arg3[%c0_35, %65, %c0_36] : memref<1x128x32xf32, #tpu.memory_space<vmem>>, vector<1x1x32xf32>
    %67 = vector.shape_cast %66 : vector<1x1x32xf32> to vector<1x32xf32>
    %c5 = arith.constant 5 : index
    %c0_37 = arith.constant 0 : index
    %68 = vector.load %arg12[%c5, %c0_37] : memref<8x32xf32, #tpu.memory_space<vmem>>, vector<1x32xf32>
    tpu.vector_store %arg12[%c5, %c0_37], %67 {strides = array<i32>} : memref<8x32xf32, #tpu.memory_space<vmem>>, vector<1x32xf32>,
    %c0_38 = arith.constant 0 : index
    %69 = arith.index_cast %64 : i32 to index
    %c0_39 = arith.constant 0 : index
    %70 = vector.load %arg5[%c0_38, %69, %c0_39] : memref<1x128x2xf32, #tpu.memory_space<vmem>>, vector<1x1x2xf32>
    %71 = vector.shape_cast %70 : vector<1x1x2xf32> to vector<1x2xf32>
    %c5_40 = arith.constant 5 : index
    %c0_41 = arith.constant 0 : index
    %72 = vector.load %arg13[%c5_40, %c0_41] : memref<8x2xf32, #tpu.memory_space<vmem>>, vector<1x2xf32>
    tpu.vector_store %arg13[%c5_40, %c0_41], %71 {strides = array<i32>} : memref<8x2xf32, #tpu.memory_space<vmem>>, vector<1x2xf32>,
    %c6_i32 = arith.constant 6 : i32
    %73 = arith.addi %0, %c6_i32 : i32
    %74 = arith.index_cast %arg0 : i32 to index
    %75 = arith.index_cast %73 : i32 to index
    %76 = memref.load %arg2[%74, %75] : memref<2x8xi32, #tpu.memory_space<smem>>
    %c0_42 = arith.constant 0 : index
    %77 = arith.index_cast %76 : i32 to index
    %c0_43 = arith.constant 0 : index
    %78 = vector.load %arg3[%c0_42, %77, %c0_43] : memref<1x128x32xf32, #tpu.memory_space<vmem>>, vector<1x1x32xf32>
    %79 = vector.shape_cast %78 : vector<1x1x32xf32> to vector<1x32xf32>
    %c6 = arith.constant 6 : index
    %c0_44 = arith.constant 0 : index
    %80 = vector.load %arg12[%c6, %c0_44] : memref<8x32xf32, #tpu.memory_space<vmem>>, vector<1x32xf32>
    tpu.vector_store %arg12[%c6, %c0_44], %79 {strides = array<i32>} : memref<8x32xf32, #tpu.memory_space<vmem>>, vector<1x32xf32>,
    %c0_45 = arith.constant 0 : index
    %81 = arith.index_cast %76 : i32 to index
    %c0_46 = arith.constant 0 : index
    %82 = vector.load %arg5[%c0_45, %81, %c0_46] : memref<1x128x2xf32, #tpu.memory_space<vmem>>, vector<1x1x2xf32>
    %83 = vector.shape_cast %82 : vector<1x1x2xf32> to vector<1x2xf32>
    %c6_47 = arith.constant 6 : index
    %c0_48 = arith.constant 0 : index
    %84 = vector.load %arg13[%c6_47, %c0_48] : memref<8x2xf32, #tpu.memory_space<vmem>>, vector<1x2xf32>
    tpu.vector_store %arg13[%c6_47, %c0_48], %83 {strides = array<i32>} : memref<8x2xf32, #tpu.memory_space<vmem>>, vector<1x2xf32>,
    %c7_i32 = arith.constant 7 : i32
    %85 = arith.addi %0, %c7_i32 : i32
    %86 = arith.index_cast %arg0 : i32 to index
    %87 = arith.index_cast %85 : i32 to index
    %88 = memref.load %arg2[%86, %87] : memref<2x8xi32, #tpu.memory_space<smem>>
    %c0_49 = arith.constant 0 : index
    %89 = arith.index_cast %88 : i32 to index
    %c0_50 = arith.constant 0 : index
    %90 = vector.load %arg3[%c0_49, %89, %c0_50] : memref<1x128x32xf32, #tpu.memory_space<vmem>>, vector<1x1x32xf32>
    %91 = vector.shape_cast %90 : vector<1x1x32xf32> to vector<1x32xf32>
    %c7 = arith.constant 7 : index
    %c0_51 = arith.constant 0 : index
    %92 = vector.load %arg12[%c7, %c0_51] : memref<8x32xf32, #tpu.memory_space<vmem>>, vector<1x32xf32>
    tpu.vector_store %arg12[%c7, %c0_51], %91 {strides = array<i32>} : memref<8x32xf32, #tpu.memory_space<vmem>>, vector<1x32xf32>,
    %c0_52 = arith.constant 0 : index
    %93 = arith.index_cast %88 : i32 to index
    %c0_53 = arith.constant 0 : index
    %94 = vector.load %arg5[%c0_52, %93, %c0_53] : memref<1x128x2xf32, #tpu.memory_space<vmem>>, vector<1x1x2xf32>
    %95 = vector.shape_cast %94 : vector<1x1x2xf32> to vector<1x2xf32>
    %c7_54 = arith.constant 7 : index
    %c0_55 = arith.constant 0 : index
    %96 = vector.load %arg13[%c7_54, %c0_55] : memref<8x2xf32, #tpu.memory_space<vmem>>, vector<1x2xf32>
    tpu.vector_store %arg13[%c7_54, %c0_55], %95 {strides = array<i32>} : memref<8x2xf32, #tpu.memory_space<vmem>>, vector<1x2xf32>,
    %c0_56 = arith.constant 0 : index
    %c0_57 = arith.constant 0 : index
    %c0_58 = arith.constant 0 : index
    %97 = vector.load %arg3[%c0_56, %c0_57, %c0_58] : memref<1x128x32xf32, #tpu.memory_space<vmem>>, vector<1x128x32xf32>
    %98 = vector.shape_cast %97 : vector<1x128x32xf32> to vector<128x32xf32>
    %c0_59 = arith.constant 0 : index
    %c0_60 = arith.constant 0 : index
    %c0_61 = arith.constant 0 : index
    %99 = vector.load %arg4[%c0_59, %c0_60, %c0_61] : memref<1x32x128xf32, #tpu.memory_space<vmem>>, vector<1x32x128xf32>
    %100 = vector.shape_cast %99 : vector<1x32x128xf32> to vector<32x128xf32>
    %c0_62 = arith.constant 0 : index
    %c0_63 = arith.constant 0 : index
    %c0_64 = arith.constant 0 : index
    %101 = vector.load %arg6[%c0_62, %c0_63, %c0_64] : memref<1x2x128xf32, #tpu.memory_space<vmem>>, vector<1x2x128xf32>
    %102 = vector.shape_cast %101 : vector<1x2x128xf32> to vector<2x128xf32>
    %c0_65 = arith.constant 0 : index
    %c0_66 = arith.constant 0 : index
    %c0_67 = arith.constant 0 : index
    %103 = vector.load %arg7[%c0_65, %c0_66, %c0_67] : memref<1x8x128xf32, #tpu.memory_space<vmem>>, vector<1x8x128xf32>
    %104 = vector.shape_cast %103 : vector<1x8x128xf32> to vector<8x128xf32>
    %c0_68 = arith.constant 0 : index
    %c0_69 = arith.constant 0 : index
    %105 = vector.load %arg12[%c0_68, %c0_69] : memref<8x32xf32, #tpu.memory_space<vmem>>, vector<8x32xf32>
    %c0_70 = arith.constant 0 : index
    %c0_71 = arith.constant 0 : index
    %106 = vector.load %arg13[%c0_70, %c0_71] : memref<8x2xf32, #tpu.memory_space<vmem>>, vector<8x2xf32>
    %cst = arith.constant dense<0.000000e+00> : vector<32xf32>
    %107 = vector.multi_reduction <add>, %98, %cst [0] : vector<128x32xf32> to vector<32xf32>
    %108 = vector.shape_cast %107 : vector<32xf32> to vector<1x32xf32>
    %cst_72 = arith.constant 6.250000e-02 : f32
    %109 = vector.broadcast %cst_72 : f32 to vector<1x32xf32>
    %110 = arith.mulf %108, %109 : vector<1x32xf32>
    %c0_73 = arith.constant 0 : index
    %c0_74 = arith.constant 0 : index
    %111 = vector.load %arg9[%c0_73, %c0_74] : memref<32x32xf32, #tpu.memory_space<vmem>>, vector<32x32xf32>
    %cst_75 = arith.constant dense<0.000000e+00> : vector<1x32xf32>
    %112 = tpu.matmul %110, %111, %cst_75 {dimension_numbers = #tpu.dot_dimension_numbers<[1], [0], [0], [1], [0, 0, 1, 1], [], []>} : vector<1x32xf32>, vector<32x32xf32>, vector<1x32xf32> -> vector<1x32xf32>
    %cst_76 = arith.constant 0xFF800000 : f32
    %113 = vector.broadcast %cst_76 : f32 to vector<8x128xf32>
    %114 = arith.cmpf oeq, %104, %113 : vector<8x128xf32>
    %cst_77 = arith.constant 1.000000e+00 : f32
    %115 = vector.broadcast %cst_77 : f32 to vector<8x128xf32>
    %116 = arith.select %114, %115, %104 : vector<8x128xi1>, vector<8x128xf32>
    %cst_78 = arith.constant dense<0.000000e+00> : vector<8x32xf32>
    %117 = tpu.matmul %116, %98, %cst_78 {dimension_numbers = #tpu.dot_dimension_numbers<[1], [0], [0], [1], [0, 0, 1, 1], [], []>} : vector<8x128xf32>, vector<128x32xf32>, vector<8x32xf32> -> vector<8x32xf32>
    %cst_79 = arith.constant 6.250000e-02 : f32
    %118 = vector.broadcast %cst_79 : f32 to vector<8x32xf32>
    %119 = arith.mulf %117, %118 : vector<8x32xf32>
    %c0_80 = arith.constant 0 : index
    %c0_81 = arith.constant 0 : index
    %120 = vector.load %arg10[%c0_80, %c0_81] : memref<32x32xf32, #tpu.memory_space<vmem>>, vector<32x32xf32>
    %cst_82 = arith.constant dense<0.000000e+00> : vector<8x32xf32>
    %121 = tpu.matmul %119, %120, %cst_82 {dimension_numbers = #tpu.dot_dimension_numbers<[1], [0], [0], [1], [0, 0, 1, 1], [], []>} : vector<8x32xf32>, vector<32x32xf32>, vector<8x32xf32> -> vector<8x32xf32>
    %c0_83 = arith.constant 0 : index
    %c0_84 = arith.constant 0 : index
    %122 = vector.load %arg8[%c0_83, %c0_84] : memref<32x32xf32, #tpu.memory_space<vmem>>, vector<32x32xf32>
    %cst_85 = arith.constant dense<0.000000e+00> : vector<8x32xf32>
    %123 = tpu.matmul %105, %122, %cst_85 {dimension_numbers = #tpu.dot_dimension_numbers<[1], [0], [0], [1], [0, 0, 1, 1], [], []>} : vector<8x32xf32>, vector<32x32xf32>, vector<8x32xf32> -> vector<8x32xf32>
    %124 = vector.broadcast %112 : vector<1x32xf32> to vector<8x32xf32>
    %125 = arith.addf %123, %124 : vector<8x32xf32>
    %126 = arith.addf %125, %121 : vector<8x32xf32>
    %127 = vector.extract_strided_slice %106 {offsets = [0, 0], sizes = [8, 1], strides = [1, 1]} : vector<8x2xf32> to vector<8x1xf32>
    %128 = vector.extract_strided_slice %102 {offsets = [0, 0], sizes = [1, 128], strides = [1, 1]} : vector<2x128xf32> to vector<1x128xf32>
    %129 = vector.broadcast %127 : vector<8x1xf32> to vector<8x128xf32>
    %130 = vector.broadcast %128 : vector<1x128xf32> to vector<8x128xf32>
    %131 = arith.subf %129, %130 : vector<8x128xf32>
    %132 = arith.mulf %131, %131 : vector<8x128xf32>
    %133 = vector.extract_strided_slice %106 {offsets = [0, 1], sizes = [8, 1], strides = [1, 1]} : vector<8x2xf32> to vector<8x1xf32>
    %134 = vector.extract_strided_slice %102 {offsets = [1, 0], sizes = [1, 128], strides = [1, 1]} : vector<2x128xf32> to vector<1x128xf32>
    %135 = vector.broadcast %133 : vector<8x1xf32> to vector<8x128xf32>
    %136 = vector.broadcast %134 : vector<1x128xf32> to vector<8x128xf32>
    %137 = arith.subf %135, %136 : vector<8x128xf32>
    %138 = arith.mulf %137, %137 : vector<8x128xf32>
    %139 = arith.addf %132, %138 : vector<8x128xf32>
    %140 = math.sqrt %139 : vector<8x128xf32>
    %cst_86 = arith.constant dense<0.000000e+00> : vector<8x128xf32>
    %141 = tpu.matmul %126, %100, %cst_86 {dimension_numbers = #tpu.dot_dimension_numbers<[1], [0], [0], [1], [0, 0, 1, 1], [], []>} : vector<8x32xf32>, vector<32x128xf32>, vector<8x128xf32> -> vector<8x128xf32>
    %cst_87 = arith.constant 0.176776692 : f32
    %142 = vector.broadcast %cst_87 : f32 to vector<8x128xf32>
    %143 = arith.mulf %141, %142 : vector<8x128xf32>
    %cst_88 = arith.constant 0.707106769 : f32
    %144 = vector.broadcast %cst_88 : f32 to vector<8x128xf32>
    %145 = arith.mulf %140, %144 : vector<8x128xf32>
    %146 = arith.subf %143, %145 : vector<8x128xf32>
    %147 = math.tanh %146 : vector<8x128xf32>
    %cst_89 = arith.constant 1.000000e+01 : f32
    %148 = vector.broadcast %cst_89 : f32 to vector<8x128xf32>
    %149 = arith.mulf %148, %147 : vector<8x128xf32>
    %cst_90 = arith.constant -1.000000e+08 : f32
    %150 = vector.broadcast %cst_90 : f32 to vector<8x128xf32>
    %151 = arith.select %114, %150, %104 : vector<8x128xi1>, vector<8x128xf32>
    %152 = arith.addf %149, %151 : vector<8x128xf32>
    %cst_91 = arith.constant dense<0xFF800000> : vector<8xf32>
    %153 = vector.multi_reduction <maximumf>, %152, %cst_91 [1] : vector<8x128xf32> to vector<8xf32>
    %154 = vector.shape_cast %153 : vector<8xf32> to vector<8x1xf32>
    %155 = vector.broadcast %154 : vector<8x1xf32> to vector<8x128xf32>
    %156 = arith.subf %152, %155 : vector<8x128xf32>
    %157 = math.exp %156 : vector<8x128xf32>
    %cst_92 = arith.constant dense<0.000000e+00> : vector<8xf32>
    %158 = vector.multi_reduction <add>, %157, %cst_92 [1] : vector<8x128xf32> to vector<8xf32>
    %159 = vector.shape_cast %158 : vector<8xf32> to vector<8x1xf32>
    %160 = tpu.reciprocal %159 {approx = true} : vector<8x1xf32> -> vector<8x1xf32>
    %161 = arith.mulf %159, %160 : vector<8x1xf32>
    %cst_93 = arith.constant 2.000000e+00 : f32
    %162 = vector.broadcast %cst_93 : f32 to vector<8x1xf32>
    %163 = arith.subf %162, %161 : vector<8x1xf32>
    %164 = arith.mulf %160, %163 : vector<8x1xf32>
    %165 = vector.broadcast %164 : vector<8x1xf32> to vector<8x128xf32>
    %166 = arith.mulf %157, %165 : vector<8x128xf32>
    %c0_94 = arith.constant 0 : index
    %c0_95 = arith.constant 0 : index
    %c0_96 = arith.constant 0 : index
    %167 = vector.load %arg11[%c0_94, %c0_95, %c0_96] : memref<1x8x128xf32, #tpu.memory_space<vmem>>, vector<1x8x128xf32>
    %168 = vector.shape_cast %167 : vector<1x8x128xf32> to vector<8x128xf32>
    %169 = vector.shape_cast %166 : vector<8x128xf32> to vector<1x8x128xf32>
    tpu.vector_store %arg11[%c0_94, %c0_95, %c0_96], %169 {strides = array<i32>} : memref<1x8x128xf32, #tpu.memory_space<vmem>>, vector<1x8x128xf32>,
    return
  }
  func.func @transform_0(%arg0: i32, %arg1: i32, %arg2: memref<2x8xi32, #tpu.memory_space<smem>>) -> (i32, i32, i32) {
    %c0_i32 = arith.constant 0 : i32
    %c0_i32_0 = arith.constant 0 : i32
    %c0_i32_1 = arith.constant 0 : i32
    return %arg0, %c0_i32, %c0_i32_0 : i32, i32, i32
  }
  func.func @transform_1(%arg0: i32, %arg1: i32, %arg2: memref<2x8xi32, #tpu.memory_space<smem>>) -> (i32, i32, i32) {
    %c0_i32 = arith.constant 0 : i32
    %c0_i32_0 = arith.constant 0 : i32
    %c0_i32_1 = arith.constant 0 : i32
    return %arg0, %c0_i32, %c0_i32_0 : i32, i32, i32
  }
  func.func @transform_2(%arg0: i32, %arg1: i32, %arg2: memref<2x8xi32, #tpu.memory_space<smem>>) -> (i32, i32, i32) {
    %c0_i32 = arith.constant 0 : i32
    %c0_i32_0 = arith.constant 0 : i32
    %c0_i32_1 = arith.constant 0 : i32
    return %arg0, %c0_i32, %c0_i32_0 : i32, i32, i32
  }
  func.func @transform_3(%arg0: i32, %arg1: i32, %arg2: memref<2x8xi32, #tpu.memory_space<smem>>) -> (i32, i32, i32) {
    %c0_i32 = arith.constant 0 : i32
    %c0_i32_0 = arith.constant 0 : i32
    %c0_i32_1 = arith.constant 0 : i32
    return %arg0, %c0_i32, %c0_i32_0 : i32, i32, i32
  }
  func.func @transform_4(%arg0: i32, %arg1: i32, %arg2: memref<2x8xi32, #tpu.memory_space<smem>>) -> (i32, i32, i32) {
    %c0_i32 = arith.constant 0 : i32
    %c0_i32_0 = arith.constant 0 : i32
    return %arg0, %arg1, %c0_i32 : i32, i32, i32
  }
  func.func @transform_5(%arg0: i32, %arg1: i32, %arg2: memref<2x8xi32, #tpu.memory_space<smem>>) -> (i32, i32) {
    %c0_i32 = arith.constant 0 : i32
    %c0_i32_0 = arith.constant 0 : i32
    %c0_i32_1 = arith.constant 0 : i32
    return %c0_i32, %c0_i32_0 : i32, i32
  }
  func.func @transform_6(%arg0: i32, %arg1: i32, %arg2: memref<2x8xi32, #tpu.memory_space<smem>>) -> (i32, i32) {
    %c0_i32 = arith.constant 0 : i32
    %c0_i32_0 = arith.constant 0 : i32
    %c0_i32_1 = arith.constant 0 : i32
    return %c0_i32, %c0_i32_0 : i32, i32
  }
  func.func @transform_7(%arg0: i32, %arg1: i32, %arg2: memref<2x8xi32, #tpu.memory_space<smem>>) -> (i32, i32) {
    %c0_i32 = arith.constant 0 : i32
    %c0_i32_0 = arith.constant 0 : i32
    %c0_i32_1 = arith.constant 0 : i32
    return %c0_i32, %c0_i32_0 : i32, i32
  }
  func.func @transform_8(%arg0: i32, %arg1: i32, %arg2: memref<2x8xi32, #tpu.memory_space<smem>>) -> (i32, i32, i32) {
    %c0_i32 = arith.constant 0 : i32
    %c0_i32_0 = arith.constant 0 : i32
    return %arg0, %arg1, %c0_i32 : i32, i32, i32
  }
}

</mosaic_0001>

<llo_original>
// kernel: tpu_custom_call.1
$region0: #{tpu_custom_call.1}
  #allocation0 [shape = 'u32[]', space=smem, size = 0x4, offset = 0x4, fixed_abs, tag = 'smem constant byte address 0x4 - core index']
  #allocation1 [shape = 'u32[144,128]{1,0:T(1,128)}', space=vmem, size = 0x12000, scoped, tag = 'internal scratch']
  #allocation2 [shape = 'f32[8,32]{1,0:T(8,128)}', space=vmem, size = 0x1000, scoped, tag = 'scratch operand']
  #allocation3 [shape = 'f32[8,2]{1,0:T(8,128)}', space=vmem, size = 0x1000, scoped, tag = 'scratch operand']
  #allocation4 [shape = 's32[1]{0}', space=sflag, size = 0x4, scoped, tag = 'scoped memory for tpu_custom_call.1']
  #allocation5 [shape = 'u8[1024]{0}', space=smem, size = 0x400, scoped, tag = 'prefetched SMEM operand 0']
  %s0 = inlined_call_operand.vmem [shape: s32[2,8], index: 0, kind: input, shape index: {}]
  %s1 = inlined_call_operand.vmem [shape: f32[2,128,32], index: 1, kind: input, shape index: {}]
  %s2 = inlined_call_operand.vmem [shape: f32[2,32,128], index: 2, kind: input, shape index: {}]
  %s3 = inlined_call_operand.vmem [shape: f32[2,128,2], index: 3, kind: input, shape index: {}]
  %s4 = inlined_call_operand.vmem [shape: f32[2,2,128], index: 4, kind: input, shape index: {}]
  %s5 = inlined_call_operand.vmem [shape: f32[2,8,128], index: 5, kind: input, shape index: {}]
  %s6 = inlined_call_operand.vmem [shape: f32[32,32], index: 6, kind: input, shape index: {}]
  %s7 = inlined_call_operand.vmem [shape: f32[32,32], index: 7, kind: input, shape index: {}]
  %s8 = inlined_call_operand.vmem [shape: f32[32,32], index: 8, kind: input, shape index: {}]
  %s9 = inlined_call_operand.hbm [shape: f32[2,8,128], index: 9, kind: output, shape index: {}]
  %s10 = sld [smem:[#allocation0]]
  $region65: #{tpu_custom_call.1} parent=0
    _
  %s12 = ssub.s32 1, %s10
  %s13 = scalar_select 0, %s12, %s10
  %s14 = sshll.u32 %s0, 4
  %s15 = int_to_ptr.vmem [resolvable:$true] %s14
  %17 = dma.vmem_to_smem %s15, 32, [#allocation5], [#allocation4]
  %18 = dma.done [#allocation4], 32
  %19 = sfence
  $region1: #{tpu_custom_call.1} parent=0
    #allocation6 [shape = 'u8[8192]{0}', space=vmem, size = 0x2000, scoped, tag = 'output window, operand 0']
    #allocation7 [shape = 's32[2]{0}', space=sflag, size = 0x8, scoped, tag = 'scoped memory for tpu_custom_call.1']
    %20 = vsyncpa [#allocation7], 0
    %s21 = scalar_lea.sflag [#allocation7], 1
    %22 = vsyncpa %s21, 0
    loop: start=0, step=1, limit=4
    $region2: #{tpu_custom_call.1} parent=1 // loop_pre_header
      _
    $region3: #{tpu_custom_call.1} parent=1 // loop_header
      %s24 = sphi 0, %s28
      %p25 = scmp.ge.s32.totalorder %s24, 4
      %s31 = sphi 0, %s43
      %s32 = sphi 0, %s39
      %s33 = sphi 0, %s31
      %s34 = sphi 0, %s32
      %s35 = sphi 0, %s33
      %s36 = sphi 0, %s34
      %s46 = sphi 0, %s48
      %s49 = sphi 0, %s46
      %s50 = sphi 0, %s49
      %s66 = sphi 0, %s50
      %s72 = sphi 0, %s74
      %s75 = sphi 0, %s72
      %s76 = sphi 0, %s75
      %s92 = sphi 0, %s76
      %s98 = sphi 0, %s100
      %s101 = sphi 0, %s98
      %s102 = sphi 0, %s101
      %s118 = sphi 0, %s102
      %s124 = sphi 0, %s126
      %s127 = sphi 0, %s124
      %s128 = sphi 0, %s127
      %s144 = sphi 0, %s128
      %s152 = sphi 0, %s154
      %s155 = sphi 0, %s152
      %s156 = sphi 0, %s155
      %s172 = sphi 0, %s156
      %s176 = sphi 0, %s176
      %s178 = sphi 0, %s176
      %s179 = sphi 0, %s178
      %s193 = sphi 0, %s179
      %s197 = sphi 0, %s197
      %s199 = sphi 0, %s197
      %s200 = sphi 0, %s199
      %s214 = sphi 0, %s200
      %s218 = sphi 0, %s218
      %s220 = sphi 0, %s218
      %s221 = sphi 0, %s220
      %s235 = sphi 0, %s221
      %s243 = sphi 0, %s245
      %s246 = sphi 0, %s243
      %s247 = sphi 0, %s246
      %s263 = sphi 0, %s247
    $region4: #{tpu_custom_call.1} parent=1 // loop_header_branch
      %27 = sbr.rel (%p25) target = $region8
    $region5: #{tpu_custom_call.1} parent=1 // loop_body
      %s29 = ssub.s32 %s24, 1
      %s30 = ssub.s32 %s24, 2
      %s37 = sadd.s32 1, %s32
      %p38 = scmp.ge.s32.totalorder %s37, 1
      %s39 = scalar_select %p38, 0, %s37
      %s40 = sadd.s32 1, %s31
      %s41 = scalar_select %p38, %s40, %s31
      %p42 = scmp.ge.s32.totalorder %s41, 2
      %s43 = scalar_select %p42, 0, %s41
      %s44 = ssub.s32 %s31, %s43
      %p45 = scmp.eq.s32.totalorder %s44, 0
      %s47 = sadd.s32 %s46, 1
      %s48 = scalar_select %p45, %s46, %s47
      %p51 = pneg %p45
      %p52 = scmp.eq.s32.totalorder %s24, 1
      %p53 = por %p51, %p52
      %p54 = scmp.ne.s32.totalorder %s46, %s49
      %p55 = scmp.eq.s32.totalorder %s24, 0
      %p56 = por %p54, %p55
      %p57 = scmp.ne.s32.totalorder %s46, %s49
      %p58 = scmp.eq.s32.totalorder %s29, 1
      %p59 = por %p57, %p58
      %p60 = scmp.ne.s32.totalorder %s49, %s50
      %p61 = scmp.eq.s32.totalorder %s29, 0
      %p62 = por %p60, %p61
      %p63 = scmp.ne.s32.totalorder %s49, %s50
      %p64 = scmp.eq.s32.totalorder %s30, 1
      %p65 = por %p63, %p64
      %p67 = scmp.ne.s32.totalorder %s50, %s66
      %p68 = scmp.eq.s32.totalorder %s30, 0
      %p69 = por %p67, %p68
      %s70 = ssub.s32 %s31, %s43
      %p71 = scmp.eq.s32.totalorder %s70, 0
      %s73 = sadd.s32 %s72, 1
      %s74 = scalar_select %p71, %s72, %s73
      %p77 = pneg %p71
      %p78 = scmp.eq.s32.totalorder %s24, 1
      %p79 = por %p77, %p78
      %p80 = scmp.ne.s32.totalorder %s72, %s75
      %p81 = scmp.eq.s32.totalorder %s24, 0
      %p82 = por %p80, %p81
      %p83 = scmp.ne.s32.totalorder %s72, %s75
      %p84 = scmp.eq.s32.totalorder %s29, 1
      %p85 = por %p83, %p84
      %p86 = scmp.ne.s32.totalorder %s75, %s76
      %p87 = scmp.eq.s32.totalorder %s29, 0
      %p88 = por %p86, %p87
      %p89 = scmp.ne.s32.totalorder %s75, %s76
      %p90 = scmp.eq.s32.totalorder %s30, 1
      %p91 = por %p89, %p90
      %p93 = scmp.ne.s32.totalorder %s76, %s92
      %p94 = scmp.eq.s32.totalorder %s30, 0
      %p95 = por %p93, %p94
      %s96 = ssub.s32 %s31, %s43
      %p97 = scmp.eq.s32.totalorder %s96, 0
      %s99 = sadd.s32 %s98, 1
      %s100 = scalar_select %p97, %s98, %s99
      %p103 = pneg %p97
      %p104 = scmp.eq.s32.totalorder %s24, 1
      %p105 = por %p103, %p104
      %p106 = scmp.ne.s32.totalorder %s98, %s101
      %p107 = scmp.eq.s32.totalorder %s24, 0
      %p108 = por %p106, %p107
      %p109 = scmp.ne.s32.totalorder %s98, %s101
      %p110 = scmp.eq.s32.totalorder %s29, 1
      %p111 = por %p109, %p110
      %p112 = scmp.ne.s32.totalorder %s101, %s102
      %p113 = scmp.eq.s32.totalorder %s29, 0
      %p114 = por %p112, %p113
      %p115 = scmp.ne.s32.totalorder %s101, %s102
      %p116 = scmp.eq.s32.totalorder %s30, 1
      %p117 = por %p115, %p116
      %p119 = scmp.ne.s32.totalorder %s102, %s118
      %p120 = scmp.eq.s32.totalorder %s30, 0
      %p121 = por %p119, %p120
      %s122 = ssub.s32 %s31, %s43
      %p123 = scmp.eq.s32.totalorder %s122, 0
      %s125 = sadd.s32 %s124, 1
      %s126 = scalar_select %p123, %s124, %s125
      %p129 = pneg %p123
      %p130 = scmp.eq.s32.totalorder %s24, 1
      %p131 = por %p129, %p130
      %p132 = scmp.ne.s32.totalorder %s124, %s127
      %p133 = scmp.eq.s32.totalorder %s24, 0
      %p134 = por %p132, %p133
      %p135 = scmp.ne.s32.totalorder %s124, %s127
      %p136 = scmp.eq.s32.totalorder %s29, 1
      %p137 = por %p135, %p136
      %p138 = scmp.ne.s32.totalorder %s127, %s128
      %p139 = scmp.eq.s32.totalorder %s29, 0
      %p140 = por %p138, %p139
      %p141 = scmp.ne.s32.totalorder %s127, %s128
      %p142 = scmp.eq.s32.totalorder %s30, 1
      %p143 = por %p141, %p142
      %p145 = scmp.ne.s32.totalorder %s128, %s144
      %p146 = scmp.eq.s32.totalorder %s30, 0
      %p147 = por %p145, %p146
      %s148 = ssub.s32 %s31, %s43
      %s149 = ssub.s32 %s32, %s39
      %s150 = sor.u32 %s148, %s149
      %p151 = scmp.eq.s32.totalorder %s150, 0
      %s153 = sadd.s32 %s152, 1
      %s154 = scalar_select %p151, %s152, %s153
      %p157 = pneg %p151
      %p158 = scmp.eq.s32.totalorder %s24, 1
      %p159 = por %p157, %p158
      %p160 = scmp.ne.s32.totalorder %s152, %s155
      %p161 = scmp.eq.s32.totalorder %s24, 0
      %p162 = por %p160, %p161
      %p163 = scmp.ne.s32.totalorder %s152, %s155
      %p164 = scmp.eq.s32.totalorder %s29, 1
      %p165 = por %p163, %p164
      %p166 = scmp.ne.s32.totalorder %s155, %s156
      %p167 = scmp.eq.s32.totalorder %s29, 0
      %p168 = por %p166, %p167
      %p169 = scmp.ne.s32.totalorder %s155, %s156
      %p170 = scmp.eq.s32.totalorder %s30, 1
      %p171 = por %p169, %p170
      %p173 = scmp.ne.s32.totalorder %s156, %s172
      %p174 = scmp.eq.s32.totalorder %s30, 0
      %p175 = por %p173, %p174
      %s177 = sadd.s32 %s176, 1
      %p180 = scmp.eq.s32.totalorder %s24, 1
      %p181 = scmp.ne.s32.totalorder %s176, %s178
      %p182 = scmp.eq.s32.totalorder %s24, 0
      %p183 = por %p181, %p182
      %p184 = scmp.ne.s32.totalorder %s176, %s178
      %p185 = scmp.eq.s32.totalorder %s29, 1
      %p186 = por %p184, %p185
      %p187 = scmp.ne.s32.totalorder %s178, %s179
      %p188 = scmp.eq.s32.totalorder %s29, 0
      %p189 = por %p187, %p188
      %p190 = scmp.ne.s32.totalorder %s178, %s179
      %p191 = scmp.eq.s32.totalorder %s30, 1
      %p192 = por %p190, %p191
      %p194 = scmp.ne.s32.totalorder %s179, %s193
      %p195 = scmp.eq.s32.totalorder %s30, 0
      %p196 = por %p194, %p195
      %s198 = sadd.s32 %s197, 1
      %p201 = scmp.eq.s32.totalorder %s24, 1
      %p202 = scmp.ne.s32.totalorder %s197, %s199
      %p203 = scmp.eq.s32.totalorder %s24, 0
      %p204 = por %p202, %p203
      %p205 = scmp.ne.s32.totalorder %s197, %s199
      %p206 = scmp.eq.s32.totalorder %s29, 1
      %p207 = por %p205, %p206
      %p208 = scmp.ne.s32.totalorder %s199, %s200
      %p209 = scmp.eq.s32.totalorder %s29, 0
      %p210 = por %p208, %p209
      %p211 = scmp.ne.s32.totalorder %s199, %s200
      %p212 = scmp.eq.s32.totalorder %s30, 1
      %p213 = por %p211, %p212
      %p215 = scmp.ne.s32.totalorder %s200, %s214
      %p216 = scmp.eq.s32.totalorder %s30, 0
      %p217 = por %p215, %p216
      %s219 = sadd.s32 %s218, 1
      %p222 = scmp.eq.s32.totalorder %s24, 1
      %p223 = scmp.ne.s32.totalorder %s218, %s220
      %p224 = scmp.eq.s32.totalorder %s24, 0
      %p225 = por %p223, %p224
      %p226 = scmp.ne.s32.totalorder %s218, %s220
      %p227 = scmp.eq.s32.totalorder %s29, 1
      %p228 = por %p226, %p227
      %p229 = scmp.ne.s32.totalorder %s220, %s221
      %p230 = scmp.eq.s32.totalorder %s29, 0
      %p231 = por %p229, %p230
      %p232 = scmp.ne.s32.totalorder %s220, %s221
      %p233 = scmp.eq.s32.totalorder %s30, 1
      %p234 = por %p232, %p233
      %p236 = scmp.ne.s32.totalorder %s221, %s235
      %p237 = scmp.eq.s32.totalorder %s30, 0
      %p238 = por %p236, %p237
      %s239 = ssub.s32 %s31, %s43
      %s240 = ssub.s32 %s32, %s39
      %s241 = sor.u32 %s239, %s240
      %p242 = scmp.eq.s32.totalorder %s241, 0
      %s244 = sadd.s32 %s243, 1
      %s245 = scalar_select %p242, %s243, %s244
      %p248 = pneg %p242
      %p249 = scmp.eq.s32.totalorder %s24, 1
      %p250 = por %p248, %p249
      %p251 = scmp.ne.s32.totalorder %s243, %s246
      %p252 = scmp.eq.s32.totalorder %s24, 0
      %p253 = por %p251, %p252
      %p254 = scmp.ne.s32.totalorder %s243, %s246
      %p255 = scmp.eq.s32.totalorder %s29, 1
      %p256 = por %p254, %p255
      %p257 = scmp.ne.s32.totalorder %s246, %s247
      %p258 = scmp.eq.s32.totalorder %s29, 0
      %p259 = por %p257, %p258
      %p260 = scmp.ne.s32.totalorder %s246, %s247
      %p261 = scmp.eq.s32.totalorder %s30, 1
      %p262 = por %p260, %p261
      %p264 = scmp.ne.s32.totalorder %s247, %s263
      %p265 = scmp.eq.s32.totalorder %s30, 0
      %p266 = por %p264, %p265
      %p267 = scmp.le.s32.totalorder 1, %s24
      %p268 = scmp.lt.s32.totalorder %s24, 3
      %p269 = pnand %p267, %p268
      %p270 = pneg %p269
      // Predicated region
      $region9: #{tpu_custom_call.1} parent=5 // pred_check
        _
      $region10: #{tpu_custom_call.1} parent=5 // pred_check_branch
        %272 = sbr.rel (%p269) target = $region12
      $region11: #{tpu_custom_call.1} parent=5 // pred_region
        %s273 = ssub.s32 %s24, 1
        // Predicated region
        $region13: #{tpu_custom_call.1} parent=11 // pred_check
          %p274 = pneg %p189
        $region14: #{tpu_custom_call.1} parent=11 // pred_check_branch
          %276 = sbr.rel (%p274) target = $region16
        $region15: #{tpu_custom_call.1} parent=11 // pred_region
          _
        $region16: #{tpu_custom_call.1} parent=11 // pred_fallthru
          _
        // Predicated region
        $region17: #{tpu_custom_call.1} parent=11 // pred_check
          %p277 = pneg %p210
        $region18: #{tpu_custom_call.1} parent=11 // pred_check_branch
          %279 = sbr.rel (%p277) target = $region20
        $region19: #{tpu_custom_call.1} parent=11 // pred_region
          _
        $region20: #{tpu_custom_call.1} parent=11 // pred_fallthru
          _
        // Predicated region
        $region21: #{tpu_custom_call.1} parent=11 // pred_check
          %p280 = pneg %p231
        $region22: #{tpu_custom_call.1} parent=11 // pred_check_branch
          %282 = sbr.rel (%p280) target = $region24
        $region23: #{tpu_custom_call.1} parent=11 // pred_region
          _
        $region24: #{tpu_custom_call.1} parent=11 // pred_fallthru
          _
      $region12: #{tpu_custom_call.1} parent=5 // pred_fallthru
        _
      %p283 = scmp.lt.s32.totalorder %s24, 2
      // Predicated region
      $region25: #{tpu_custom_call.1} parent=5 // pred_check
        %p284 = pneg %p283
      $region26: #{tpu_custom_call.1} parent=5 // pred_check_branch
        %286 = sbr.rel (%p284) target = $region28
      $region27: #{tpu_custom_call.1} parent=5 // pred_region
        // Predicated region
        $region29: #{tpu_custom_call.1} parent=27 // pred_check
          %p287 = pneg %p56
        $region30: #{tpu_custom_call.1} parent=27 // pred_check_branch
          %289 = sbr.rel (%p287) target = $region32
        $region31: #{tpu_custom_call.1} parent=27 // pred_region
          %p290 = scmp.lt.s32.totalorder %s31, 1
          %s291 = scalar_select %p290, %s31, 1
          %s292 = smul.addr %s291, 16
          %s293 = smul.addr %s292, 8
          %s294 = scalar_lea.vmem %s1, %s293
        $region32: #{tpu_custom_call.1} parent=27 // pred_fallthru
          _
        // Predicated region
        $region33: #{tpu_custom_call.1} parent=27 // pred_check
          %p295 = pneg %p82
        $region34: #{tpu_custom_call.1} parent=27 // pred_check_branch
          %297 = sbr.rel (%p295) target = $region36
        $region35: #{tpu_custom_call.1} parent=27 // pred_region
          %p298 = scmp.lt.s32.totalorder %s31, 1
          %s299 = scalar_select %p298, %s31, 1
          %s300 = smul.addr %s299, 4
          %s301 = smul.addr %s300, 8
          %s302 = scalar_lea.vmem %s2, %s301
        $region36: #{tpu_custom_call.1} parent=27 // pred_fallthru
          _
        // Predicated region
        $region37: #{tpu_custom_call.1} parent=27 // pred_check
          %p303 = pneg %p108
        $region38: #{tpu_custom_call.1} parent=27 // pred_check_branch
          %305 = sbr.rel (%p303) target = $region40
        $region39: #{tpu_custom_call.1} parent=27 // pred_region
          %p306 = scmp.lt.s32.totalorder %s31, 1
          %s307 = scalar_select %p306, %s31, 1
          %s308 = smul.addr %s307, 16
          %s309 = smul.addr %s308, 8
          %s310 = scalar_lea.vmem %s3, %s309
        $region40: #{tpu_custom_call.1} parent=27 // pred_fallthru
          _
        // Predicated region
        $region41: #{tpu_custom_call.1} parent=27 // pred_check
          %p311 = pneg %p134
        $region42: #{tpu_custom_call.1} parent=27 // pred_check_branch
          %313 = sbr.rel (%p311) target = $region44
        $region43: #{tpu_custom_call.1} parent=27 // pred_region
          %p314 = scmp.lt.s32.totalorder %s31, 1
          %s315 = scalar_select %p314, %s31, 1
          %s316 = smul.addr %s315, 2
          %s317 = scalar_lea.vmem %s4, %s316
        $region44: #{tpu_custom_call.1} parent=27 // pred_fallthru
          _
        // Predicated region
        $region45: #{tpu_custom_call.1} parent=27 // pred_check
          %p318 = pneg %p162
        $region46: #{tpu_custom_call.1} parent=27 // pred_check_branch
          %320 = sbr.rel (%p318) target = $region48
        $region47: #{tpu_custom_call.1} parent=27 // pred_region
          %p321 = scmp.lt.s32.totalorder %s31, 1
          %s322 = scalar_select %p321, %s31, 1
          %p323 = scmp.lt.s32.totalorder %s32, 0
          %s324 = scalar_select %p323, %s32, 0
          %s325 = sadd.s32 %s324, %s322
          %s326 = smul.addr %s325, 8
          %s327 = scalar_lea.vmem %s5, %s326
        $region48: #{tpu_custom_call.1} parent=27 // pred_fallthru
          _
      $region28: #{tpu_custom_call.1} parent=5 // pred_fallthru
        _
      %p328 = scmp.le.s32.totalorder 1, %s24
      %p329 = scmp.lt.s32.totalorder %s24, 3
      %p330 = pnand %p328, %p329
      %p331 = pneg %p330
      // Predicated region
      $region49: #{tpu_custom_call.1} parent=5 // pred_check
        _
      $region50: #{tpu_custom_call.1} parent=5 // pred_check_branch
        %333 = sbr.rel (%p330) target = $region52
      $region51: #{tpu_custom_call.1} parent=5 // pred_region
        %s334 = ssub.s32 %s24, 1
        %p335 = scmp.lt.s32.totalorder %s33, 1
        %s336 = scalar_select %p335, %s33, 1
        %s337 = smul.addr %s336, 16
        %s338 = smul.addr %s337, 8
        %s339 = scalar_lea.vmem %s1, %s338
        %p340 = pneg %p62
        %p341 = pneg %p59
        %p342 = scmp.lt.s32.totalorder %s33, 1
        %s343 = scalar_select %p342, %s33, 1
        %s344 = smul.addr %s343, 4
        %s345 = smul.addr %s344, 8
        %s346 = scalar_lea.vmem %s2, %s345
        %p347 = pneg %p88
        %p348 = pneg %p85
        %p349 = scmp.lt.s32.totalorder %s33, 1
        %s350 = scalar_select %p349, %s33, 1
        %s351 = smul.addr %s350, 16
        %s352 = smul.addr %s351, 8
        %s353 = scalar_lea.vmem %s3, %s352
        %p354 = pneg %p114
        %p355 = pneg %p111
        %p356 = scmp.lt.s32.totalorder %s33, 1
        %s357 = scalar_select %p356, %s33, 1
        %s358 = smul.addr %s357, 2
        %s359 = scalar_lea.vmem %s4, %s358
        %p360 = pneg %p140
        %p361 = pneg %p137
        %p362 = scmp.lt.s32.totalorder %s33, 1
        %s363 = scalar_select %p362, %s33, 1
        %p364 = scmp.lt.s32.totalorder %s34, 0
        %s365 = scalar_select %p364, %s34, 0
        %s366 = sadd.s32 %s365, %s363
        %s367 = smul.addr %s366, 8
        %s368 = scalar_lea.vmem %s5, %s367
        %p369 = pneg %p168
        %p370 = pneg %p165
        %p371 = pneg %p189
        %p372 = pneg %p186
        %p373 = pneg %p210
        %p374 = pneg %p207
        %p375 = pneg %p231
        %p376 = pneg %p228
        %p377 = pneg %p259
        %p378 = pneg %p256
        %s379 = sand.u32 %s246, 1
        %s380 = scalar_lea.sflag [#allocation7], %s379
        %s381 = sand.u32 %s246, 1
        %s382 = smul.addr %s381, 8
        %s383 = scalar_lea.vmem [#allocation6], %s382
        %p384 = scmp.lt.s32.totalorder %s33, 1
        %s385 = scalar_select %p384, %s33, 1
        %s386 = smul.addr %s385, 16
        %s387 = smul.addr %s386, 8
        %s388 = scalar_lea.vmem %s1, %s387
        %p389 = scmp.lt.s32.totalorder %s33, 1
        %s390 = scalar_select %p389, %s33, 1
        %s391 = smul.addr %s390, 4
        %s392 = smul.addr %s391, 8
        %s393 = scalar_lea.vmem %s2, %s392
        %p394 = scmp.lt.s32.totalorder %s33, 1
        %s395 = scalar_select %p394, %s33, 1
        %s396 = smul.addr %s395, 16
        %s397 = smul.addr %s396, 8
        %s398 = scalar_lea.vmem %s3, %s397
        %p399 = scmp.lt.s32.totalorder %s33, 1
        %s400 = scalar_select %p399, %s33, 1
        %s401 = smul.addr %s400, 2
        %s402 = scalar_lea.vmem %s4, %s401
        %p403 = scmp.lt.s32.totalorder %s33, 1
        %s404 = scalar_select %p403, %s33, 1
        %p405 = scmp.lt.s32.totalorder %s34, 0
        %s406 = scalar_select %p405, %s34, 0
        %s407 = sadd.s32 %s406, %s404
        %s408 = smul.addr %s407, 8
        %s409 = scalar_lea.vmem %s5, %s408
        %s410 = smul.u32 %s34, 8
        %s411 = sshra.s32 %s410, 7
        %s412 = sand.u32 %s410, 127
        %s413 = sadd.s32 %s411, %s33
        %s414 = smul.u32 %s413, 128
        %s415 = sshra.s32 %s410, 7
        %s416 = sand.u32 %s410, 127
        %s417 = sadd.s32 %s414, %s416
        %s418 = sld [smem:[#allocation5 + %s417]]
        %s419 = scalar_lea.vmem %s388, %s418
        %v420 = vld [vmem:[%s419] sm:$0x1]
        %vm421 = vcmask 253952
        %422 = vst.msk [vmem:[#allocation2] sm:$0x1] %vm421, %v420
        %s423 = scalar_lea.vmem %s398, %s418
        %v424 = vld [vmem:[%s423] sm:$0x1]
        %vm425 = vcmask 8192
        %426 = vst.msk [vmem:[#allocation3] sm:$0x1] %vm425, %v424
        %s427 = sadd.s32 %s410, 1
        %s428 = sshra.s32 %s427, 7
        %s429 = sand.u32 %s427, 127
        %s430 = sadd.s32 %s428, %s33
        %s431 = smul.u32 %s430, 128
        %s432 = sshra.s32 %s427, 7
        %s433 = sand.u32 %s427, 127
        %s434 = sadd.s32 %s431, %s433
        %s435 = sld [smem:[#allocation5 + %s434]]
        %s436 = scalar_lea.vmem %s388, %s435
        %v437 = vld [vmem:[%s436] sm:$0x1]
        %438 = vst.msk [vmem:[#allocation2 + $0x1] sm:$0x1] %vm421, %v437
        %s439 = scalar_lea.vmem %s398, %s435
        %v440 = vld [vmem:[%s439] sm:$0x1]
        %441 = vst.msk [vmem:[#allocation3 + $0x1] sm:$0x1] %vm425, %v440
        %s442 = sadd.s32 %s410, 2
        %s443 = sshra.s32 %s442, 7
        %s444 = sand.u32 %s442, 127
        %s445 = sadd.s32 %s443, %s33
        %s446 = smul.u32 %s445, 128
        %s447 = sshra.s32 %s442, 7
        %s448 = sand.u32 %s442, 127
        %s449 = sadd.s32 %s446, %s448
        %s450 = sld [smem:[#allocation5 + %s449]]
        %s451 = scalar_lea.vmem %s388, %s450
        %v452 = vld [vmem:[%s451] sm:$0x1]
        %453 = vst.msk [vmem:[#allocation2 + $0x2] sm:$0x1] %vm421, %v452
        %s454 = scalar_lea.vmem %s398, %s450
        %v455 = vld [vmem:[%s454] sm:$0x1]
        %456 = vst.msk [vmem:[#allocation3 + $0x2] sm:$0x1] %vm425, %v455
        %s457 = sadd.s32 %s410, 3
        %s458 = sshra.s32 %s457, 7
        %s459 = sand.u32 %s457, 127
        %s460 = sadd.s32 %s458, %s33
        %s461 = smul.u32 %s460, 128
        %s462 = sshra.s32 %s457, 7
        %s463 = sand.u32 %s457, 127
        %s464 = sadd.s32 %s461, %s463
        %s465 = sld [smem:[#allocation5 + %s464]]
        %s466 = scalar_lea.vmem %s388, %s465
        %v467 = vld [vmem:[%s466] sm:$0x1]
        %468 = vst.msk [vmem:[#allocation2 + $0x3] sm:$0x1] %vm421, %v467
        %s469 = scalar_lea.vmem %s398, %s465
        %v470 = vld [vmem:[%s469] sm:$0x1]
        %471 = vst.msk [vmem:[#allocation3 + $0x3] sm:$0x1] %vm425, %v470
        %s472 = sadd.s32 %s410, 4
        %s473 = sshra.s32 %s472, 7
        %s474 = sand.u32 %s472, 127
        %s475 = sadd.s32 %s473, %s33
        %s476 = smul.u32 %s475, 128
        %s477 = sshra.s32 %s472, 7
        %s478 = sand.u32 %s472, 127
        %s479 = sadd.s32 %s476, %s478
        %s480 = sld [smem:[#allocation5 + %s479]]
        %s481 = scalar_lea.vmem %s388, %s480
        %v482 = vld [vmem:[%s481] sm:$0x1]
        %483 = vst.msk [vmem:[#allocation2 + $0x4] sm:$0x1] %vm421, %v482
        %s484 = scalar_lea.vmem %s398, %s480
        %v485 = vld [vmem:[%s484] sm:$0x1]
        %486 = vst.msk [vmem:[#allocation3 + $0x4] sm:$0x1] %vm425, %v485
        %s487 = sadd.s32 %s410, 5
        %s488 = sshra.s32 %s487, 7
        %s489 = sand.u32 %s487, 127
        %s490 = sadd.s32 %s488, %s33
        %s491 = smul.u32 %s490, 128
        %s492 = sshra.s32 %s487, 7
        %s493 = sand.u32 %s487, 127
        %s494 = sadd.s32 %s491, %s493
        %s495 = sld [smem:[#allocation5 + %s494]]
        %s496 = scalar_lea.vmem %s388, %s495
        %v497 = vld [vmem:[%s496] sm:$0x1]
        %498 = vst.msk [vmem:[#allocation2 + $0x5] sm:$0x1] %vm421, %v497
        %s499 = scalar_lea.vmem %s398, %s495
        %v500 = vld [vmem:[%s499] sm:$0x1]
        %501 = vst.msk [vmem:[#allocation3 + $0x5] sm:$0x1] %vm425, %v500
        %s502 = sadd.s32 %s410, 6
        %s503 = sshra.s32 %s502, 7
        %s504 = sand.u32 %s502, 127
        %s505 = sadd.s32 %s503, %s33
        %s506 = smul.u32 %s505, 128
        %s507 = sshra.s32 %s502, 7
        %s508 = sand.u32 %s502, 127
        %s509 = sadd.s32 %s506, %s508
        %s510 = sld [smem:[#allocation5 + %s509]]
        %s511 = scalar_lea.vmem %s388, %s510
        %v512 = vld [vmem:[%s511] sm:$0x1]
        %513 = vst.msk [vmem:[#allocation2 + $0x6] sm:$0x1] %vm421, %v512
        %s514 = scalar_lea.vmem %s398, %s510
        %v515 = vld [vmem:[%s514] sm:$0x1]
        %516 = vst.msk [vmem:[#allocation3 + $0x6] sm:$0x1] %vm425, %v515
        %s517 = sadd.s32 %s410, 7
        %s518 = sshra.s32 %s517, 7
        %s519 = sand.u32 %s517, 127
        %s520 = sadd.s32 %s518, %s33
        %s521 = smul.u32 %s520, 128
        %s522 = sshra.s32 %s517, 7
        %s523 = sand.u32 %s517, 127
        %s524 = sadd.s32 %s521, %s523
        %s525 = sld [smem:[#allocation5 + %s524]]
        %s526 = scalar_lea.vmem %s388, %s525
        %v527 = vld [vmem:[%s526] sm:$0x1]
        %528 = vst.msk [vmem:[#allocation2 + $0x7] sm:$0x1] %vm421, %v527
        %s529 = scalar_lea.vmem %s398, %s525
        %v530 = vld [vmem:[%s529] sm:$0x1]
        %531 = vst.msk [vmem:[#allocation3 + $0x7] sm:$0x1] %vm425, %v530
        %v532 = vld [vmem:[%s388] sm:$0xff]
        %v533 = vld [vmem:[%s388 + $0x8] sm:$0xff]
        %v534 = vld [vmem:[%s388 + $0x10] sm:$0xff]
        %v535 = vld [vmem:[%s388 + $0x18] sm:$0xff]
        %v536 = vld [vmem:[%s388 + $0x20] sm:$0xff]
        %v537 = vld [vmem:[%s388 + $0x28] sm:$0xff]
        %v538 = vld [vmem:[%s388 + $0x30] sm:$0xff]
        %v539 = vld [vmem:[%s388 + $0x38] sm:$0xff]
        %v540 = vld [vmem:[%s388 + $0x40] sm:$0xff]
        %v541 = vld [vmem:[%s388 + $0x48] sm:$0xff]
        %v542 = vld [vmem:[%s388 + $0x50] sm:$0xff]
        %v543 = vld [vmem:[%s388 + $0x58] sm:$0xff]
        %v544 = vld [vmem:[%s388 + $0x60] sm:$0xff]
        %v545 = vld [vmem:[%s388 + $0x68] sm:$0xff]
        %v546 = vld [vmem:[%s388 + $0x70] sm:$0xff]
        %v547 = vld [vmem:[%s388 + $0x78] sm:$0xff]
        %v548 = vld [vmem:[%s393] sm:$0xff]
        %v549 = vld [vmem:[%s393 + $0x8] sm:$0xff]
        %v550 = vld [vmem:[%s393 + $0x10] sm:$0xff]
        %v551 = vld [vmem:[%s393 + $0x18] sm:$0xff]
        %v552 = vld [vmem:[%s402] sm:$0x3]
        %v553 = vld [vmem:[%s409] sm:$0xff]
        %v554 = vld [vmem:[#allocation2] sm:$0xff]
        %v555 = vld [vmem:[#allocation3] sm:$0xff]
        %vm556 = vcmask 261120
        %v557 = vsel %vm556, %v532, 0.0
        %v558 = vsel %vm556, %v533, 0.0
        %v559 = vadd.f32 %v557, %v558
        %v560 = vsel %vm556, %v534, 0.0
        %v561 = vadd.f32 %v559, %v560
        %v562 = vsel %vm556, %v535, 0.0
        %v563 = vadd.f32 %v561, %v562
        %v564 = vsel %vm556, %v536, 0.0
        %v565 = vadd.f32 %v563, %v564
        %v566 = vsel %vm556, %v537, 0.0
        %v567 = vadd.f32 %v565, %v566
        %v568 = vsel %vm556, %v538, 0.0
        %v569 = vadd.f32 %v567, %v568
        %v570 = vsel %vm556, %v539, 0.0
        %v571 = vadd.f32 %v569, %v570
        %v572 = vsel %vm556, %v540, 0.0
        %v573 = vadd.f32 %v571, %v572
        %v574 = vsel %vm556, %v541, 0.0
        %v575 = vadd.f32 %v573, %v574
        %v576 = vsel %vm556, %v542, 0.0
        %v577 = vadd.f32 %v575, %v576
        %v578 = vsel %vm556, %v543, 0.0
        %v579 = vadd.f32 %v577, %v578
        %v580 = vsel %vm556, %v544, 0.0
        %v581 = vadd.f32 %v579, %v580
        %v582 = vsel %vm556, %v545, 0.0
        %v583 = vadd.f32 %v581, %v582
        %v584 = vsel %vm556, %v546, 0.0
        %v585 = vadd.f32 %v583, %v584
        %v586 = vsel %vm556, %v547, 0.0
        %v587 = vadd.f32 %v585, %v586
        %v588 = vrot.slane %v587, 4
        %v589 = vadd.f32 %v587, %v588
        %v590 = vrot.slane %v589, 2
        %v591 = vadd.f32 %v589, %v590
        %v592 = vrot.slane %v591, 1
        %v593 = vadd.f32 %v591, %v592
        %v594 = vmul.f32 %v593, 0.0625
        %v595 = vld [vmem:[%s7] sm:$0xff]
        %v596 = vld [vmem:[%s7 + $0x8] sm:$0xff]
        %v597 = vld [vmem:[%s7 + $0x10] sm:$0xff]
        %v598 = vld [vmem:[%s7 + $0x18] sm:$0xff]
        %v600 = vsel %vm556, %v594, 0
        %602 = vmatprep.subr.mxu0 0.0
        %603 = vmatpush1.msra.mxu0 %v595
        %604 = vmatprep.subr.mxu0 0.0
        %605 = vmatpush1.msra.mxu0 %v596
        %606 = vmatprep.subr.mxu0 0.0
        %607 = vmatpush1.msra.mxu0 %v597
        %608 = vmatprep.subr.mxu0 0.0
        %609 = vmatpush1.msra.mxu0 %v598
        %610 = vmatprep.subr.mxu0 0.0
        %611 = vmatpush1.msra.mxu0 0.0
        %612 = vmatprep.subr.mxu0 0.0
        %613 = vmatpush1.msra.mxu0 0.0
        %614 = vmatprep.subr.mxu0 0.0
        %615 = vmatpush1.msra.mxu0 0.0
        %616 = vmatprep.subr.mxu0 0.0
        %617 = vmatpush1.msra.mxu0 0.0
        %618 = vmatprep.subr.mxu0 0.0
        %619 = vmatpush1.msra.mxu0 0.0
        %620 = vmatprep.subr.mxu0 0.0
        %621 = vmatpush1.msra.mxu0 0.0
        %622 = vmatprep.subr.mxu0 0.0
        %623 = vmatpush1.msra.mxu0 0.0
        %624 = vmatprep.subr.mxu0 0.0
        %625 = vmatpush1.msra.mxu0 0.0
        %626 = vmatprep.subr.mxu0 0.0
        %627 = vmatpush1.msra.mxu0 0.0
        %628 = vmatprep.subr.mxu0 0.0
        %629 = vmatpush1.msra.mxu0 0.0
        %630 = vmatprep.subr.mxu0 0.0
        %631 = vmatpush1.msra.mxu0 0.0
        %632 = vmatprep.subr.mxu0 0.0
        %633 = vmatpush1.msra.mxu0 0.0
        %634 = vmatprep.subr.mxu0 0.0
        %635 = vmatpush1.msra.mxu0 0.0
        %636 = vmatprep.subr.mxu0 0.0
        %637 = vmatpush1.msra.mxu0 0.0
        %638 = vmatprep.subr.mxu0 0.0
        %639 = vmatpush1.msra.mxu0 0.0
        %640 = vmatprep.subr.mxu0 0.0
        %641 = vmatpush1.msra.mxu0 0.0
        %642 = vmatprep.subr.mxu0 0.0
        %643 = vmatpush1.msra.mxu0 0.0
        %644 = vmatprep.subr.mxu0 0.0
        %645 = vmatpush1.msra.mxu0 0.0
        %646 = vmatprep.subr.mxu0 0.0
        %647 = vmatpush1.msra.mxu0 0.0
        %648 = vmatprep.subr.mxu0 0.0
        %649 = vmatpush1.msra.mxu0 0.0
        %650 = vmatprep.subr.mxu0 0.0
        %651 = vmatpush1.msra.mxu0 0.0
        %652 = vmatprep.subr.mxu0 0.0
        %653 = vmatpush1.msra.mxu0 0.0
        %654 = vmatprep.subr.mxu0 0.0
        %655 = vmatpush1.msra.mxu0 0.0
        %656 = vmatprep.subr.mxu0 0.0
        %657 = vmatpush1.msra.mxu0 0.0
        %658 = vmatprep.subr.mxu0 0.0
        %659 = vmatpush1.msra.mxu0 0.0
        %660 = vmatprep.subr.mxu0 0.0
        %661 = vmatpush1.msra.mxu0 0.0
        %662 = vmatprep.subr.mxu0 0.0
        %663 = vmatpush1.msra.mxu0 0.0
        %664 = vmatprep.subr.mxu0 0.0
        %665 = vmatpush1.msra.mxu0 0.0
        %666 = vmatprep.mubr.f32.mxu0 0.0
        %667 = vmatmul.mubr.f32.gmra.mrb[0].mxu0 %v600
        %v668 = vpop.f32.mrb[0].mxu0
        %v669 = vadd.f32 0.0, %v668
        %v670 = vpop.f32.mrb[0].mxu0
        %671 = vdwg.mxu0
        %vm672 = vcmp.eq.f32.partialorder %v553, -inf
        %v673 = vsel %vm672, 1.0, %v553
        %674 = vmatprep.subr.mxu0 0.0
        %675 = vmatpush1.msra.mxu0 %v532
        %676 = vmatprep.subr.mxu0 0.0
        %677 = vmatpush1.msra.mxu0 %v533
        %678 = vmatprep.subr.mxu0 0.0
        %679 = vmatpush1.msra.mxu0 %v534
        %680 = vmatprep.subr.mxu0 0.0
        %681 = vmatpush1.msra.mxu0 %v535
        %682 = vmatprep.subr.mxu0 0.0
        %683 = vmatpush1.msra.mxu0 %v536
        %684 = vmatprep.subr.mxu0 0.0
        %685 = vmatpush1.msra.mxu0 %v537
        %686 = vmatprep.subr.mxu0 0.0
        %687 = vmatpush1.msra.mxu0 %v538
        %688 = vmatprep.subr.mxu0 0.0
        %689 = vmatpush1.msra.mxu0 %v539
        %690 = vmatprep.subr.mxu0 0.0
        %691 = vmatpush1.msra.mxu0 %v540
        %692 = vmatprep.subr.mxu0 0.0
        %693 = vmatpush1.msra.mxu0 %v541
        %694 = vmatprep.subr.mxu0 0.0
        %695 = vmatpush1.msra.mxu0 %v542
        %696 = vmatprep.subr.mxu0 0.0
        %697 = vmatpush1.msra.mxu0 %v543
        %698 = vmatprep.subr.mxu0 0.0
        %699 = vmatpush1.msra.mxu0 %v544
        %700 = vmatprep.subr.mxu0 0.0
        %701 = vmatpush1.msra.mxu0 %v545
        %702 = vmatprep.subr.mxu0 0.0
        %703 = vmatpush1.msra.mxu0 %v546
        %704 = vmatprep.subr.mxu0 0.0
        %705 = vmatpush1.msra.mxu0 %v547
        %706 = vmatprep.subr.mxu0 0.0
        %707 = vmatpush1.msra.mxu0 0.0
        %708 = vmatprep.subr.mxu0 0.0
        %709 = vmatpush1.msra.mxu0 0.0
        %710 = vmatprep.subr.mxu0 0.0
        %711 = vmatpush1.msra.mxu0 0.0
        %712 = vmatprep.subr.mxu0 0.0
        %713 = vmatpush1.msra.mxu0 0.0
        %714 = vmatprep.subr.mxu0 0.0
        %715 = vmatpush1.msra.mxu0 0.0
        %716 = vmatprep.subr.mxu0 0.0
        %717 = vmatpush1.msra.mxu0 0.0
        %718 = vmatprep.subr.mxu0 0.0
        %719 = vmatpush1.msra.mxu0 0.0
        %720 = vmatprep.subr.mxu0 0.0
        %721 = vmatpush1.msra.mxu0 0.0
        %722 = vmatprep.subr.mxu0 0.0
        %723 = vmatpush1.msra.mxu0 0.0
        %724 = vmatprep.subr.mxu0 0.0
        %725 = vmatpush1.msra.mxu0 0.0
        %726 = vmatprep.subr.mxu0 0.0
        %727 = vmatpush1.msra.mxu0 0.0
        %728 = vmatprep.subr.mxu0 0.0
        %729 = vmatpush1.msra.mxu0 0.0
        %730 = vmatprep.subr.mxu0 0.0
        %731 = vmatpush1.msra.mxu0 0.0
        %732 = vmatprep.subr.mxu0 0.0
        %733 = vmatpush1.msra.mxu0 0.0
        %734 = vmatprep.subr.mxu0 0.0
        %735 = vmatpush1.msra.mxu0 0.0
        %736 = vmatprep.subr.mxu0 0.0
        %737 = vmatpush1.msra.mxu0 0.0
        %738 = vmatprep.mubr.f32.mxu0 0.0
        %739 = vmatmul.mubr.f32.gmra.mrb[0].mxu0 %v673
        %v740 = vpop.f32.mrb[0].mxu0
        %v741 = vadd.f32 0.0, %v740
        %v742 = vpop.f32.mrb[0].mxu0
        %743 = vdwg.mxu0
        %v744 = vmul.f32 %v741, 0.0625
        %v745 = vld [vmem:[%s8] sm:$0xff]
        %v746 = vld [vmem:[%s8 + $0x8] sm:$0xff]
        %v747 = vld [vmem:[%s8 + $0x10] sm:$0xff]
        %v748 = vld [vmem:[%s8 + $0x18] sm:$0xff]
        %v750 = vsel %vm556, %v744, 0
        %752 = vmatprep.subr.mxu0 0.0
        %753 = vmatpush1.msra.mxu0 %v745
        %754 = vmatprep.subr.mxu0 0.0
        %755 = vmatpush1.msra.mxu0 %v746
        %756 = vmatprep.subr.mxu0 0.0
        %757 = vmatpush1.msra.mxu0 %v747
        %758 = vmatprep.subr.mxu0 0.0
        %759 = vmatpush1.msra.mxu0 %v748
        %760 = vmatprep.subr.mxu0 0.0
        %761 = vmatpush1.msra.mxu0 0.0
        %762 = vmatprep.subr.mxu0 0.0
        %763 = vmatpush1.msra.mxu0 0.0
        %764 = vmatprep.subr.mxu0 0.0
        %765 = vmatpush1.msra.mxu0 0.0
        %766 = vmatprep.subr.mxu0 0.0
        %767 = vmatpush1.msra.mxu0 0.0
        %768 = vmatprep.subr.mxu0 0.0
        %769 = vmatpush1.msra.mxu0 0.0
        %770 = vmatprep.subr.mxu0 0.0
        %771 = vmatpush1.msra.mxu0 0.0
        %772 = vmatprep.subr.mxu0 0.0
        %773 = vmatpush1.msra.mxu0 0.0
        %774 = vmatprep.subr.mxu0 0.0
        %775 = vmatpush1.msra.mxu0 0.0
        %776 = vmatprep.subr.mxu0 0.0
        %777 = vmatpush1.msra.mxu0 0.0
        %778 = vmatprep.subr.mxu0 0.0
        %779 = vmatpush1.msra.mxu0 0.0
        %780 = vmatprep.subr.mxu0 0.0
        %781 = vmatpush1.msra.mxu0 0.0
        %782 = vmatprep.subr.mxu0 0.0
        %783 = vmatpush1.msra.mxu0 0.0
        %784 = vmatprep.subr.mxu0 0.0
        %785 = vmatpush1.msra.mxu0 0.0
        %786 = vmatprep.subr.mxu0 0.0
        %787 = vmatpush1.msra.mxu0 0.0
        %788 = vmatprep.subr.mxu0 0.0
        %789 = vmatpush1.msra.mxu0 0.0
        %790 = vmatprep.subr.mxu0 0.0
        %791 = vmatpush1.msra.mxu0 0.0
        %792 = vmatprep.subr.mxu0 0.0
        %793 = vmatpush1.msra.mxu0 0.0
        %794 = vmatprep.subr.mxu0 0.0
        %795 = vmatpush1.msra.mxu0 0.0
        %796 = vmatprep.subr.mxu0 0.0
        %797 = vmatpush1.msra.mxu0 0.0
        %798 = vmatprep.subr.mxu0 0.0
        %799 = vmatpush1.msra.mxu0 0.0
        %800 = vmatprep.subr.mxu0 0.0
        %801 = vmatpush1.msra.mxu0 0.0
        %802 = vmatprep.subr.mxu0 0.0
        %803 = vmatpush1.msra.mxu0 0.0
        %804 = vmatprep.subr.mxu0 0.0
        %805 = vmatpush1.msra.mxu0 0.0
        %806 = vmatprep.subr.mxu0 0.0
        %807 = vmatpush1.msra.mxu0 0.0
        %808 = vmatprep.subr.mxu0 0.0
        %809 = vmatpush1.msra.mxu0 0.0
        %810 = vmatprep.subr.mxu0 0.0
        %811 = vmatpush1.msra.mxu0 0.0
        %812 = vmatprep.subr.mxu0 0.0
        %813 = vmatpush1.msra.mxu0 0.0
        %814 = vmatprep.subr.mxu0 0.0
        %815 = vmatpush1.msra.mxu0 0.0
        %816 = vmatprep.mubr.f32.mxu0 0.0
        %817 = vmatmul.mubr.f32.gmra.mrb[0].mxu0 %v750
        %v818 = vpop.f32.mrb[0].mxu0
        %v819 = vadd.f32 0.0, %v818
        %v820 = vpop.f32.mrb[0].mxu0
        %821 = vdwg.mxu0
        %v822 = vld [vmem:[%s6] sm:$0xff]
        %v823 = vld [vmem:[%s6 + $0x8] sm:$0xff]
        %v824 = vld [vmem:[%s6 + $0x10] sm:$0xff]
        %v825 = vld [vmem:[%s6 + $0x18] sm:$0xff]
        %v826 = vlaneseq
        %v827 = vshrl.u32 %v826, 7
        %v828 = vsub.s32 0, %v827
        %v829 = vrot.slane %v669, %v828
        %v831 = vsel %vm556, %v554, 0
        %833 = vmatprep.subr.mxu0 0.0
        %834 = vmatpush1.msra.mxu0 %v822
        %835 = vmatprep.subr.mxu0 0.0
        %836 = vmatpush1.msra.mxu0 %v823
        %837 = vmatprep.subr.mxu0 0.0
        %838 = vmatpush1.msra.mxu0 %v824
        %839 = vmatprep.subr.mxu0 0.0
        %840 = vmatpush1.msra.mxu0 %v825
        %841 = vmatprep.subr.mxu0 0.0
        %842 = vmatpush1.msra.mxu0 0.0
        %843 = vmatprep.subr.mxu0 0.0
        %844 = vmatpush1.msra.mxu0 0.0
        %845 = vmatprep.subr.mxu0 0.0
        %846 = vmatpush1.msra.mxu0 0.0
        %847 = vmatprep.subr.mxu0 0.0
        %848 = vmatpush1.msra.mxu0 0.0
        %849 = vmatprep.subr.mxu0 0.0
        %850 = vmatpush1.msra.mxu0 0.0
        %851 = vmatprep.subr.mxu0 0.0
        %852 = vmatpush1.msra.mxu0 0.0
        %853 = vmatprep.subr.mxu0 0.0
        %854 = vmatpush1.msra.mxu0 0.0
        %855 = vmatprep.subr.mxu0 0.0
        %856 = vmatpush1.msra.mxu0 0.0
        %857 = vmatprep.subr.mxu0 0.0
        %858 = vmatpush1.msra.mxu0 0.0
        %859 = vmatprep.subr.mxu0 0.0
        %860 = vmatpush1.msra.mxu0 0.0
        %861 = vmatprep.subr.mxu0 0.0
        %862 = vmatpush1.msra.mxu0 0.0
        %863 = vmatprep.subr.mxu0 0.0
        %864 = vmatpush1.msra.mxu0 0.0
        %865 = vmatprep.subr.mxu0 0.0
        %866 = vmatpush1.msra.mxu0 0.0
        %867 = vmatprep.subr.mxu0 0.0
        %868 = vmatpush1.msra.mxu0 0.0
        %869 = vmatprep.subr.mxu0 0.0
        %870 = vmatpush1.msra.mxu0 0.0
        %871 = vmatprep.subr.mxu0 0.0
        %872 = vmatpush1.msra.mxu0 0.0
        %873 = vmatprep.subr.mxu0 0.0
        %874 = vmatpush1.msra.mxu0 0.0
        %875 = vmatprep.subr.mxu0 0.0
        %876 = vmatpush1.msra.mxu0 0.0
        %877 = vmatprep.subr.mxu0 0.0
        %878 = vmatpush1.msra.mxu0 0.0
        %879 = vmatprep.subr.mxu0 0.0
        %880 = vmatpush1.msra.mxu0 0.0
        %881 = vmatprep.subr.mxu0 0.0
        %882 = vmatpush1.msra.mxu0 0.0
        %883 = vmatprep.subr.mxu0 0.0
        %884 = vmatpush1.msra.mxu0 0.0
        %885 = vmatprep.subr.mxu0 0.0
        %886 = vmatpush1.msra.mxu0 0.0
        %887 = vmatprep.subr.mxu0 0.0
        %888 = vmatpush1.msra.mxu0 0.0
        %889 = vmatprep.subr.mxu0 0.0
        %890 = vmatpush1.msra.mxu0 0.0
        %891 = vmatprep.subr.mxu0 0.0
        %892 = vmatpush1.msra.mxu0 0.0
        %893 = vmatprep.subr.mxu0 0.0
        %894 = vmatpush1.msra.mxu0 0.0
        %895 = vmatprep.subr.mxu0 0.0
        %896 = vmatpush1.msra.mxu0 0.0
        %897 = vmatprep.mubr.f32.mxu0 0.0
        %898 = vmatmul.mubr.f32.gmra.mrb[0].mxu0 %v831
        %v899 = vpop.f32.mrb[0].mxu0
        %v900 = vadd.f32 %v829, %v899
        %v901 = vpop.f32.mrb[0].mxu0
        %902 = vdwg.mxu0
        %v903 = vadd.f32 %v900, %v819
        %905 = vset.pattern.permute.xlu0 0
        %906 = vperm.xlu0 %905, %v555
        %v907 = vpop.permute.xlu0 %906
        %v909 = vlaneseq
        %v910 = vshrl.u32 %v909, 7
        %v911 = vsub.s32 0, %v910
        %v912 = vrot.slane %v552, %v911
        %v913 = vsub.f32 %v907, %v912
        %v914 = vmul.f32 %v913, %v913
        %915 = vset.pattern.permute.xlu0 1
        %916 = vperm.xlu0 %915, %v555
        %v917 = vpop.permute.xlu0 %916
        %v919 = vlaneseq
        %v920 = vshrl.u32 %v919, 7
        %v921 = vsub.s32 1, %v920
        %v922 = vrot.slane %v552, %v921
        %v923 = vsub.f32 %v917, %v922
        %v924 = vmul.f32 %v923, %v923
        %v925 = vadd.f32 %v914, %v924
        %v926 = vrsqrt.pop %v925
        %v927 = vmul.f32 %v925, %v926
        %vm928 = vcmp.eq.f32.partialorder %v925, inf
        %v929 = vsel %vm928, %v925, %v927
        %vm930 = vcmp.eq.f32.partialorder %v925, 0.0
        %v931 = vand.u32 %v925, 2147483648
        %v932 = vsel %vm930, %v931, %v929
        %v934 = vsel %vm556, %v903, 0
        %936 = vmatprep.subr.mxu0 0.0
        %937 = vmatpush1.msra.mxu0 %v548
        %938 = vmatprep.subr.mxu0 0.0
        %939 = vmatpush1.msra.mxu0 %v549
        %940 = vmatprep.subr.mxu0 0.0
        %941 = vmatpush1.msra.mxu0 %v550
        %942 = vmatprep.subr.mxu0 0.0
        %943 = vmatpush1.msra.mxu0 %v551
        %944 = vmatprep.subr.mxu0 0.0
        %945 = vmatpush1.msra.mxu0 0.0
        %946 = vmatprep.subr.mxu0 0.0
        %947 = vmatpush1.msra.mxu0 0.0
        %948 = vmatprep.subr.mxu0 0.0
        %949 = vmatpush1.msra.mxu0 0.0
        %950 = vmatprep.subr.mxu0 0.0
        %951 = vmatpush1.msra.mxu0 0.0
        %952 = vmatprep.subr.mxu0 0.0
        %953 = vmatpush1.msra.mxu0 0.0
        %954 = vmatprep.subr.mxu0 0.0
        %955 = vmatpush1.msra.mxu0 0.0
        %956 = vmatprep.subr.mxu0 0.0
        %957 = vmatpush1.msra.mxu0 0.0
        %958 = vmatprep.subr.mxu0 0.0
        %959 = vmatpush1.msra.mxu0 0.0
        %960 = vmatprep.subr.mxu0 0.0
        %961 = vmatpush1.msra.mxu0 0.0
        %962 = vmatprep.subr.mxu0 0.0
        %963 = vmatpush1.msra.mxu0 0.0
        %964 = vmatprep.subr.mxu0 0.0
        %965 = vmatpush1.msra.mxu0 0.0
        %966 = vmatprep.subr.mxu0 0.0
        %967 = vmatpush1.msra.mxu0 0.0
        %968 = vmatprep.subr.mxu0 0.0
        %969 = vmatpush1.msra.mxu0 0.0
        %970 = vmatprep.subr.mxu0 0.0
        %971 = vmatpush1.msra.mxu0 0.0
        %972 = vmatprep.subr.mxu0 0.0
        %973 = vmatpush1.msra.mxu0 0.0
        %974 = vmatprep.subr.mxu0 0.0
        %975 = vmatpush1.msra.mxu0 0.0
        %976 = vmatprep.subr.mxu0 0.0
        %977 = vmatpush1.msra.mxu0 0.0
        %978 = vmatprep.subr.mxu0 0.0
        %979 = vmatpush1.msra.mxu0 0.0
        %980 = vmatprep.subr.mxu0 0.0
        %981 = vmatpush1.msra.mxu0 0.0
        %982 = vmatprep.subr.mxu0 0.0
        %983 = vmatpush1.msra.mxu0 0.0
        %984 = vmatprep.subr.mxu0 0.0
        %985 = vmatpush1.msra.mxu0 0.0
        %986 = vmatprep.subr.mxu0 0.0
        %987 = vmatpush1.msra.mxu0 0.0
        %988 = vmatprep.subr.mxu0 0.0
        %989 = vmatpush1.msra.mxu0 0.0
        %990 = vmatprep.subr.mxu0 0.0
        %991 = vmatpush1.msra.mxu0 0.0
        %992 = vmatprep.subr.mxu0 0.0
        %993 = vmatpush1.msra.mxu0 0.0
        %994 = vmatprep.subr.mxu0 0.0
        %995 = vmatpush1.msra.mxu0 0.0
        %996 = vmatprep.subr.mxu0 0.0
        %997 = vmatpush1.msra.mxu0 0.0
        %998 = vmatprep.subr.mxu0 0.0
        %999 = vmatpush1.msra.mxu0 0.0
        %1000 = vmatprep.mubr.f32.mxu0 0.0
        %1001 = vmatmul.mubr.f32.gmra.mrb[0].mxu0 %v934
        %v1002 = vpop.f32.mrb[0].mxu0
        %v1003 = vadd.f32 0.0, %v1002
        %v1004 = vpop.f32.mrb[0].mxu0
        %1005 = vdwg.mxu0
        %v1006 = vmul.f32 %v1003, 0.17677669
        %v1007 = vmul.f32 %v932, 0.70710677
        %v1008 = vsub.f32 %v1006, %v1007
        %v1009 = vtanh.pop %v1008
        %v1010 = vmul.f32 %v1009, 10.0
        %v1011 = vsel %vm672, -1e+08, %v553
        %v1012 = vadd.f32 %v1010, %v1011
        %1013 = vmax.xlane.f32.xlu0 %v1012
        %v1014 = vpop.xlane.xlu0 %1013
        %v1015 = vsub.f32 %v1012, %v1014
        %v1016 = vmul.f32 %v1015, 1.442695
        %v1017 = vpow.pop %v1016
        %1018 = vadd.xlane.f32.xlu0 %v1017
        %v1019 = vpop.xlane.xlu0 %1018
        %v1020 = vrcp.pop %v1019
        %v1021 = vmul.f32 %v1019, %v1020
        %v1022 = vsub.f32 2.0, %v1021
        %v1023 = vmul.f32 %v1020, %v1022
        %v1024 = vmul.f32 %v1017, %v1023
        %1025 = vst [vmem:[%s383] sm:$0xff] %v1024
        %s1026 = sand.u32 %s246, 1
        %s1027 = scalar_lea.sflag [#allocation7], %s1026
        %s1028 = sand.u32 %s246, 1
        %s1029 = smul.addr %s1028, 8
        %s1030 = scalar_lea.vmem [#allocation6], %s1029
        // Predicated region
        $region53: #{tpu_custom_call.1} parent=51 // pred_check
          %p1031 = pneg %p256
        $region54: #{tpu_custom_call.1} parent=51 // pred_check_branch
          %1033 = sbr.rel (%p1031) target = $region56
        $region55: #{tpu_custom_call.1} parent=51 // pred_region
          %s1035 = ssub.s32 128, 128
          %1036 = vsyncadd %s1027, %s1035
          %s1037 = sadd.s32 %s34, %s33
          %s1038 = smul.addr %s1037, 128
          %s1039 = scalar_lea.hbm %s9, %s1038
          %s1041 = sshll.u32 %s1030, 4
          %s1042 = int_to_ptr.vmem [resolvable:$true] %s1041
          %1044 = dma.vmem_to_hbm [thread:$0]  %s1042, 128, %s1039, %s1027
        $region56: #{tpu_custom_call.1} parent=51 // pred_fallthru
          _
      $region52: #{tpu_custom_call.1} parent=5 // pred_fallthru
        _
      %p1045 = scmp.le.s32.totalorder 2, %s24
      // Predicated region
      $region57: #{tpu_custom_call.1} parent=5 // pred_check
        %p1046 = pneg %p1045
      $region58: #{tpu_custom_call.1} parent=5 // pred_check_branch
        %1048 = sbr.rel (%p1046) target = $region60
      $region59: #{tpu_custom_call.1} parent=5 // pred_region
        %s1049 = ssub.s32 %s24, 2
        // Predicated region
        $region61: #{tpu_custom_call.1} parent=59 // pred_check
          %p1050 = pneg %p262
        $region62: #{tpu_custom_call.1} parent=59 // pred_check_branch
          %1052 = sbr.rel (%p1050) target = $region64
        $region63: #{tpu_custom_call.1} parent=59 // pred_region
          %s1053 = sand.u32 %s247, 1
          %s1054 = scalar_lea.sflag [#allocation7], %s1053
          %s1055 = sand.u32 %s247, 1
          %s1056 = smul.addr %s1055, 8
          %s1057 = scalar_lea.vmem [#allocation6], %s1056
          %1058 = dma.done %s1054, 128
        $region64: #{tpu_custom_call.1} parent=59 // pred_fallthru
          _
      $region60: #{tpu_custom_call.1} parent=5 // pred_fallthru
        _
    $region6: #{tpu_custom_call.1} parent=1 // loop_footer
      %s28 = sadd.s32 1, %s24
    $region7: #{tpu_custom_call.1} parent=1 // loop_footer_branch
      %23 = sbr.rel target = $region3
    $region8: #{tpu_custom_call.1} parent=1 // loop_exit
      _
    %1059 = vsyncpa [#allocation7], 1
    %s1060 = scalar_lea.sflag [#allocation7], 1
    %1061 = vsyncpa %s1060, 1

</llo_original>
